<compile_context>
chip_gen: v5e
topology: v5e:2x2
jax: 0.10.0
libtpu: 0.0.40
codegen_flags: <defaults>
</compile_context>

<pallas_src>
import functools

import jax
import jax.numpy as jnp
from jax.experimental import pallas as pl
from jax.experimental.pallas import tpu as pltpu

LANES = 128  # pad out_channels to a full lane width


# ----------------------------------------------------------------------------
# Pallas kernel: per-image conv (k*k shifted matmuls) + masked LN + PReLU.
# ----------------------------------------------------------------------------
def _convblock_kernel(alpha_ref,           # SMEM (1,)              PReLU slope
                      x_ref,               # VMEM (1, HWp, Cin)     flat NHWC rows (+ tail pad)
                      w_ref,               # VMEM (k*k, Cin, 128)   per-tap weights (Cout padded)
                      b_ref,               # VMEM (1, 128)          conv bias   (padded with 0)
                      g_ref,               # VMEM (1, 128)          LN gamma    (padded with 0)
                      bt_ref,              # VMEM (1, 128)          LN beta     (padded with 0)
                      o_ref,               # VMEM (1, HW, 128)      output (full HxW grid)
                      *, k, w_pitch, hw, cout):
    # Input tile is resident in VMEM; read HBM once, take the k*k taps as
    # shifted row windows of the flattened image (row pitch = input width).
    xb = x_ref[0]                                          # (HWp, Cin)

    acc = None
    for tap in range(k * k):
        di, dj = tap // k, tap % k
        t = di * w_pitch + dj
        lhs = xb[t:t + hw, :]                              # (HW, Cin)
        part = jnp.dot(lhs, w_ref[tap],                    # (HW, 128) on MXU
                       preferred_element_type=jnp.float32)
        acc = part if acc is None else acc + part
    f = acc + b_ref[...]                                   # f32, padded lanes stay exactly 0

    # LayerNorm over the real `cout` lanes only (eps matches PyTorch).
    lane = jax.lax.broadcasted_iota(jnp.int32, f.shape, 1)
    valid = lane < cout
    inv_c = 1.0 / cout
    mean = jnp.sum(f, axis=-1, keepdims=True) * inv_c       # pad lanes are 0 -> sum is exact
    d = jnp.where(valid, f - mean, 0.0)
    var = jnp.sum(d * d, axis=-1, keepdims=True) * inv_c
    y = d * jax.lax.rsqrt(var + 1e-5)
    y = y * g_ref[...] + bt_ref[...]                        # pad lanes -> 0

    # PReLU with a single shared slope (PyTorch default num_parameters=1).
    alpha = alpha_ref[0]
    y = jnp.where(y > 0, y, alpha * y)
    o_ref[0] = y.astype(o_ref.dtype)                        # full 128-lane store


# ----------------------------------------------------------------------------
# NHWC-native forward (use this when chaining blocks to avoid transposes).
# ----------------------------------------------------------------------------
@functools.partial(jax.jit,
                   static_argnames=("kernel_size", "stride", "mxu_dtype"))
def conv_block_forward_nhwc(x_nhwc, w, b, gamma, beta, alpha, *,
                            kernel_size, stride, mxu_dtype=jnp.float32):
    """x_nhwc: [B, H, W, Cin].  Returns [B, Hout, Wout, Cout] (NHWC)."""
    B, H, W, Cin = x_nhwc.shape
    Cout = w.shape[0]
    k, s = kernel_size, stride
    Hout = (H - k) // s + 1
    Wout = (W - k) // s + 1
    assert Cout <= LANES

    hw = H * W
    # Tail padding so every tap window [t, t + hw) stays in bounds.
    tail = (k - 1) * W + (k - 1)
    hwp = ((hw + tail + 7) // 8) * 8

    x_flat = x_nhwc.reshape(B, hw, Cin).astype(mxu_dtype)
    x_flat = jnp.pad(x_flat, ((0, 0), (0, hwp - hw), (0, 0)))

    # weight [Cout, Cin, kh, kw] -> [k*k, Cin, 128] (out channels zero-padded)
    w_taps = jnp.transpose(w, (2, 3, 1, 0)).reshape(k * k, Cin, Cout)
    w_taps = jnp.pad(w_taps, ((0, 0), (0, 0), (0, LANES - Cout)))
    w_taps = w_taps.astype(mxu_dtype)

    def pad_vec(v):
        return jnp.pad(v.astype(jnp.float32).reshape(1, Cout),
                       ((0, 0), (0, LANES - Cout)))

    b2, g2, bt2 = pad_vec(b), pad_vec(gamma), pad_vec(beta)
    alpha1 = alpha.reshape(1).astype(jnp.float32)

    kernel = functools.partial(_convblock_kernel,
                               k=k, w_pitch=W, hw=hw, cout=Cout)

    itemsize = x_flat.dtype.itemsize
    cost = pl.CostEstimate(
        flops=2 * B * hw * (k * k * Cin) * LANES + 10 * B * hw * LANES,
        transcendentals=B * hw,
        bytes_accessed=(B * hwp * Cin * itemsize            # input, read once
                        + k * k * Cin * LANES * itemsize    # weights
                        + 3 * LANES * 4                     # bias/gamma/beta
                        + B * hw * LANES * 4))              # output

    out = pl.pallas_call(
        kernel,
        out_shape=jax.ShapeDtypeStruct((B, hw, LANES), jnp.float32),
        grid=(B,),
        in_specs=[
            pl.BlockSpec(memory_space=pltpu.SMEM),                    # alpha
            pl.BlockSpec((1, hwp, Cin), lambda i: (i, 0, 0)),         # x (once/img)
            pl.BlockSpec((k * k, Cin, LANES), lambda i: (0, 0, 0)),   # weights
            pl.BlockSpec((1, LANES), lambda i: (0, 0)),               # bias
            pl.BlockSpec((1, LANES), lambda i: (0, 0)),               # gamma
            pl.BlockSpec((1, LANES), lambda i: (0, 0)),               # beta
        ],
        out_specs=pl.BlockSpec((1, hw, LANES), lambda i: (i, 0, 0)),
        compiler_params=pltpu.CompilerParams(
            dimension_semantics=("parallel",),
            vmem_limit_bytes=32 * 1024 * 1024),
        cost_estimate=cost,
    )(alpha1, x_flat, w_taps, b2, g2, bt2)

    # Kernel computes the stride-1 conv on the full HxW grid; pick the strided
    # positions and the real channels here (pure slicing, outside the kernel).
    out = out.reshape(B, H, W, LANES)
    return out[:, 0:s * Hout:s, 0:s * Wout:s, :Cout]


# ----------------------------------------------------------------------------
# NCHW adapter (PyTorch-facing interface).
# ----------------------------------------------------------------------------
@functools.partial(jax.jit,
                   static_argnames=("kernel_size", "stride", "mxu_dtype"))
def conv_block_forward(x, w, b, gamma, beta, alpha, *, kernel_size, stride,
                       mxu_dtype=jnp.float32):
    """x: [B, Cin, H, W] (NCHW).  Returns [B, Cout, Hout, Wout]."""
    x_nhwc = jnp.transpose(x, (0, 2, 3, 1))
    y = conv_block_forward_nhwc(x_nhwc, w, b, gamma, beta, alpha,
                                kernel_size=kernel_size, stride=stride,
                                mxu_dtype=mxu_dtype)
    return jnp.transpose(y, (0, 3, 1, 2))


# ----------------------------------------------------------------------------
# Pure-JAX reference (silent correctness check).
# ----------------------------------------------------------------------------
def _reference(x, w, b, gamma, beta, alpha, *, stride):
    f = jax.lax.conv_general_dilated(
        x, w, window_strides=(stride, stride), padding="VALID",
        dimension_numbers=("NCHW", "OIHW", "NCHW"))
    f = f + b.reshape(1, -1, 1, 1)
    y = jnp.transpose(f, (0, 2, 3, 1))
    mu = jnp.mean(y, axis=-1, keepdims=True)
    var = jnp.mean((y - mu) ** 2, axis=-1, keepdims=True)
    y = (y - mu) / jnp.sqrt(var + 1e-5) * gamma + beta
    y = jnp.where(y > 0, y, alpha * y)
    return jnp.transpose(y, (0, 3, 1, 2))


if __name__ == "__main__":
    B, Cin, H, W = 2, 4, 16, 16
    Cout, ksize, stride = 8, 3, 1

    key = jax.random.PRNGKey(0)
    kx, kw, kb = jax.random.split(key, 3)

    x = jax.random.normal(kx, (B, Cin, H, W), dtype=jnp.float32)

    fan_in = Cin * ksize * ksize
    bound = 1.0 / jnp.sqrt(jnp.float32(fan_in))
    w = jax.random.uniform(kw, (Cout, Cin, ksize, ksize),
                           minval=-bound, maxval=bound, dtype=jnp.float32)
    b = jax.random.uniform(kb, (Cout,), minval=-bound, maxval=bound,
                           dtype=jnp.float32)
    gamma = jnp.ones((Cout,), jnp.float32)          # LayerNorm weight
    beta = jnp.zeros((Cout,), jnp.float32)          # LayerNorm bias
    alpha = jnp.asarray(0.25, jnp.float32)          # PReLU default init

    ref = _reference(x, w, b, gamma, beta, alpha, stride=stride)

    # ---- f32 MXU operands: strict check against the f32 reference ----------
    out = conv_block_forward(x, w, b, gamma, beta, alpha,
                             kernel_size=ksize, stride=stride)
    out = jax.block_until_ready(out)
    assert out.shape == (B, Cout, H - ksize + 1, W - ksize + 1)
    assert jnp.allclose(out, ref, atol=1e-4, rtol=1e-4)

    # ---- bf16 MXU operands (v5e/v6e fast path), LN/PReLU stay f32 ----------
    # Compare against a reference fed bf16-rounded inputs so only the f32
    # accumulation-order difference remains.
    out_bf16 = conv_block_forward(x, w, b, gamma, beta, alpha,
                                  kernel_size=ksize, stride=stride,
                                  mxu_dtype=jnp.bfloat16)
    out_bf16 = jax.block_until_ready(out_bf16)
    ref_bf16_in = _reference(x.astype(jnp.bfloat16).astype(jnp.float32),
                             w.astype(jnp.bfloat16).astype(jnp.float32),
                             b, gamma, beta, alpha, stride=stride)
    assert jnp.allclose(out_bf16, ref_bf16_in, atol=1e-3, rtol=1e-3)

    print("KERNEL_OK")
</pallas_src>

<mosaic_0001>
module attributes {stable_mosaic.version = 11 : i64} {
  func.func @_convblock_kernel(%arg0: i32, %arg1: memref<1xf32, #tpu.memory_space<smem>>, %arg2: memref<1x296x4xf32, #tpu.memory_space<vmem>>, %arg3: memref<9x4x128xf32, #tpu.memory_space<vmem>>, %arg4: memref<1x128xf32, #tpu.memory_space<vmem>>, %arg5: memref<1x128xf32, #tpu.memory_space<vmem>>, %arg6: memref<1x128xf32, #tpu.memory_space<vmem>>, %arg7: memref<1x256x128xf32, #tpu.memory_space<vmem>>) attributes {dimension_semantics = [#tpu.dimension_semantics<parallel>], iteration_bounds = array<i64: 2>, scalar_prefetch = 0 : i64, scratch_operands = 0 : i64, tpu.core_type = #tpu.core_type<tc>, window_params = [{transform_indices = @transform_0, window_bounds = array<i64: 1>}, {transform_indices = @transform_1, window_bounds = array<i64: 1, 296, 4>}, {pipeline_mode = #tpu.pipeline_mode<synchronous>, transform_indices = @transform_2, window_bounds = array<i64: 9, 4, 128>}, {pipeline_mode = #tpu.pipeline_mode<synchronous>, transform_indices = @transform_3, window_bounds = array<i64: 1, 128>}, {pipeline_mode = #tpu.pipeline_mode<synchronous>, transform_indices = @transform_4, window_bounds = array<i64: 1, 128>}, {pipeline_mode = #tpu.pipeline_mode<synchronous>, transform_indices = @transform_5, window_bounds = array<i64: 1, 128>}, {transform_indices = @transform_6, window_bounds = array<i64: 1, 256, 128>}]} {
    %c0 = arith.constant 0 : index
    %c0_0 = arith.constant 0 : index
    %c0_1 = arith.constant 0 : index
    %0 = vector.load %arg2[%c0, %c0_0, %c0_1] : memref<1x296x4xf32, #tpu.memory_space<vmem>>, vector<1x296x4xf32>
    %1 = vector.shape_cast %0 : vector<1x296x4xf32> to vector<296x4xf32>
    %2 = vector.extract_strided_slice %1 {offsets = [0, 0], sizes = [256, 4], strides = [1, 1]} : vector<296x4xf32> to vector<256x4xf32>
    %c0_2 = arith.constant 0 : index
    %c0_3 = arith.constant 0 : index
    %c0_4 = arith.constant 0 : index
    %3 = vector.load %arg3[%c0_2, %c0_3, %c0_4] : memref<9x4x128xf32, #tpu.memory_space<vmem>>, vector<1x4x128xf32>
    %4 = vector.shape_cast %3 : vector<1x4x128xf32> to vector<4x128xf32>
    %cst = arith.constant dense<0.000000e+00> : vector<256x128xf32>
    %5 = tpu.matmul %2, %4, %cst {dimension_numbers = #tpu.dot_dimension_numbers<[1], [0], [0], [1], [0, 0, 1, 1], [], []>} : vector<256x4xf32>, vector<4x128xf32>, vector<256x128xf32> -> vector<256x128xf32>
    %6 = vector.extract_strided_slice %1 {offsets = [1, 0], sizes = [256, 4], strides = [1, 1]} : vector<296x4xf32> to vector<256x4xf32>
    %c1 = arith.constant 1 : index
    %c0_5 = arith.constant 0 : index
    %c0_6 = arith.constant 0 : index
    %7 = vector.load %arg3[%c1, %c0_5, %c0_6] : memref<9x4x128xf32, #tpu.memory_space<vmem>>, vector<1x4x128xf32>
    %8 = vector.shape_cast %7 : vector<1x4x128xf32> to vector<4x128xf32>
    %cst_7 = arith.constant dense<0.000000e+00> : vector<256x128xf32>
    %9 = tpu.matmul %6, %8, %cst_7 {dimension_numbers = #tpu.dot_dimension_numbers<[1], [0], [0], [1], [0, 0, 1, 1], [], []>} : vector<256x4xf32>, vector<4x128xf32>, vector<256x128xf32> -> vector<256x128xf32>
    %10 = arith.addf %5, %9 : vector<256x128xf32>
    %11 = vector.extract_strided_slice %1 {offsets = [2, 0], sizes = [256, 4], strides = [1, 1]} : vector<296x4xf32> to vector<256x4xf32>
    %c2 = arith.constant 2 : index
    %c0_8 = arith.constant 0 : index
    %c0_9 = arith.constant 0 : index
    %12 = vector.load %arg3[%c2, %c0_8, %c0_9] : memref<9x4x128xf32, #tpu.memory_space<vmem>>, vector<1x4x128xf32>
    %13 = vector.shape_cast %12 : vector<1x4x128xf32> to vector<4x128xf32>
    %cst_10 = arith.constant dense<0.000000e+00> : vector<256x128xf32>
    %14 = tpu.matmul %11, %13, %cst_10 {dimension_numbers = #tpu.dot_dimension_numbers<[1], [0], [0], [1], [0, 0, 1, 1], [], []>} : vector<256x4xf32>, vector<4x128xf32>, vector<256x128xf32> -> vector<256x128xf32>
    %15 = arith.addf %10, %14 : vector<256x128xf32>
    %16 = vector.extract_strided_slice %1 {offsets = [16, 0], sizes = [256, 4], strides = [1, 1]} : vector<296x4xf32> to vector<256x4xf32>
    %c3 = arith.constant 3 : index
    %c0_11 = arith.constant 0 : index
    %c0_12 = arith.constant 0 : index
    %17 = vector.load %arg3[%c3, %c0_11, %c0_12] : memref<9x4x128xf32, #tpu.memory_space<vmem>>, vector<1x4x128xf32>
    %18 = vector.shape_cast %17 : vector<1x4x128xf32> to vector<4x128xf32>
    %cst_13 = arith.constant dense<0.000000e+00> : vector<256x128xf32>
    %19 = tpu.matmul %16, %18, %cst_13 {dimension_numbers = #tpu.dot_dimension_numbers<[1], [0], [0], [1], [0, 0, 1, 1], [], []>} : vector<256x4xf32>, vector<4x128xf32>, vector<256x128xf32> -> vector<256x128xf32>
    %20 = arith.addf %15, %19 : vector<256x128xf32>
    %21 = vector.extract_strided_slice %1 {offsets = [17, 0], sizes = [256, 4], strides = [1, 1]} : vector<296x4xf32> to vector<256x4xf32>
    %c4 = arith.constant 4 : index
    %c0_14 = arith.constant 0 : index
    %c0_15 = arith.constant 0 : index
    %22 = vector.load %arg3[%c4, %c0_14, %c0_15] : memref<9x4x128xf32, #tpu.memory_space<vmem>>, vector<1x4x128xf32>
    %23 = vector.shape_cast %22 : vector<1x4x128xf32> to vector<4x128xf32>
    %cst_16 = arith.constant dense<0.000000e+00> : vector<256x128xf32>
    %24 = tpu.matmul %21, %23, %cst_16 {dimension_numbers = #tpu.dot_dimension_numbers<[1], [0], [0], [1], [0, 0, 1, 1], [], []>} : vector<256x4xf32>, vector<4x128xf32>, vector<256x128xf32> -> vector<256x128xf32>
    %25 = arith.addf %20, %24 : vector<256x128xf32>
    %26 = vector.extract_strided_slice %1 {offsets = [18, 0], sizes = [256, 4], strides = [1, 1]} : vector<296x4xf32> to vector<256x4xf32>
    %c5 = arith.constant 5 : index
    %c0_17 = arith.constant 0 : index
    %c0_18 = arith.constant 0 : index
    %27 = vector.load %arg3[%c5, %c0_17, %c0_18] : memref<9x4x128xf32, #tpu.memory_space<vmem>>, vector<1x4x128xf32>
    %28 = vector.shape_cast %27 : vector<1x4x128xf32> to vector<4x128xf32>
    %cst_19 = arith.constant dense<0.000000e+00> : vector<256x128xf32>
    %29 = tpu.matmul %26, %28, %cst_19 {dimension_numbers = #tpu.dot_dimension_numbers<[1], [0], [0], [1], [0, 0, 1, 1], [], []>} : vector<256x4xf32>, vector<4x128xf32>, vector<256x128xf32> -> vector<256x128xf32>
    %30 = arith.addf %25, %29 : vector<256x128xf32>
    %31 = vector.extract_strided_slice %1 {offsets = [32, 0], sizes = [256, 4], strides = [1, 1]} : vector<296x4xf32> to vector<256x4xf32>
    %c6 = arith.constant 6 : index
    %c0_20 = arith.constant 0 : index
    %c0_21 = arith.constant 0 : index
    %32 = vector.load %arg3[%c6, %c0_20, %c0_21] : memref<9x4x128xf32, #tpu.memory_space<vmem>>, vector<1x4x128xf32>
    %33 = vector.shape_cast %32 : vector<1x4x128xf32> to vector<4x128xf32>
    %cst_22 = arith.constant dense<0.000000e+00> : vector<256x128xf32>
    %34 = tpu.matmul %31, %33, %cst_22 {dimension_numbers = #tpu.dot_dimension_numbers<[1], [0], [0], [1], [0, 0, 1, 1], [], []>} : vector<256x4xf32>, vector<4x128xf32>, vector<256x128xf32> -> vector<256x128xf32>
    %35 = arith.addf %30, %34 : vector<256x128xf32>
    %36 = vector.extract_strided_slice %1 {offsets = [33, 0], sizes = [256, 4], strides = [1, 1]} : vector<296x4xf32> to vector<256x4xf32>
    %c7 = arith.constant 7 : index
    %c0_23 = arith.constant 0 : index
    %c0_24 = arith.constant 0 : index
    %37 = vector.load %arg3[%c7, %c0_23, %c0_24] : memref<9x4x128xf32, #tpu.memory_space<vmem>>, vector<1x4x128xf32>
    %38 = vector.shape_cast %37 : vector<1x4x128xf32> to vector<4x128xf32>
    %cst_25 = arith.constant dense<0.000000e+00> : vector<256x128xf32>
    %39 = tpu.matmul %36, %38, %cst_25 {dimension_numbers = #tpu.dot_dimension_numbers<[1], [0], [0], [1], [0, 0, 1, 1], [], []>} : vector<256x4xf32>, vector<4x128xf32>, vector<256x128xf32> -> vector<256x128xf32>
    %40 = arith.addf %35, %39 : vector<256x128xf32>
    %41 = vector.extract_strided_slice %1 {offsets = [34, 0], sizes = [256, 4], strides = [1, 1]} : vector<296x4xf32> to vector<256x4xf32>
    %c8 = arith.constant 8 : index
    %c0_26 = arith.constant 0 : index
    %c0_27 = arith.constant 0 : index
    %42 = vector.load %arg3[%c8, %c0_26, %c0_27] : memref<9x4x128xf32, #tpu.memory_space<vmem>>, vector<1x4x128xf32>
    %43 = vector.shape_cast %42 : vector<1x4x128xf32> to vector<4x128xf32>
    %cst_28 = arith.constant dense<0.000000e+00> : vector<256x128xf32>
    %44 = tpu.matmul %41, %43, %cst_28 {dimension_numbers = #tpu.dot_dimension_numbers<[1], [0], [0], [1], [0, 0, 1, 1], [], []>} : vector<256x4xf32>, vector<4x128xf32>, vector<256x128xf32> -> vector<256x128xf32>
    %45 = arith.addf %40, %44 : vector<256x128xf32>
    %c0_29 = arith.constant 0 : index
    %c0_30 = arith.constant 0 : index
    %46 = vector.load %arg4[%c0_29, %c0_30] : memref<1x128xf32, #tpu.memory_space<vmem>>, vector<1x128xf32>
    %47 = vector.broadcast %46 : vector<1x128xf32> to vector<256x128xf32>
    %48 = arith.addf %45, %47 : vector<256x128xf32>
    %49 = tpu.iota {dimensions = array<i32: 1>} : vector<256x128xi32>
    %c8_i32 = arith.constant 8 : i32
    %50 = vector.broadcast %c8_i32 : i32 to vector<256x128xi32>
    %51 = arith.cmpi slt, %49, %50 : vector<256x128xi32>
    %cst_31 = arith.constant dense<0.000000e+00> : vector<256xf32>
    %52 = vector.multi_reduction <add>, %48, %cst_31 [1] : vector<256x128xf32> to vector<256xf32>
    %53 = vector.shape_cast %52 : vector<256xf32> to vector<256x1xf32>
    %cst_32 = arith.constant 1.250000e-01 : f32
    %54 = vector.broadcast %cst_32 : f32 to vector<256x1xf32>
    %55 = arith.mulf %53, %54 : vector<256x1xf32>
    %56 = vector.broadcast %55 : vector<256x1xf32> to vector<256x128xf32>
    %57 = arith.subf %48, %56 : vector<256x128xf32>
    %cst_33 = arith.constant 0.000000e+00 : f32
    %58 = vector.broadcast %cst_33 : f32 to vector<256x128xf32>
    %59 = arith.select %51, %57, %58 : vector<256x128xi1>, vector<256x128xf32>
    %60 = arith.mulf %59, %59 : vector<256x128xf32>
    %cst_34 = arith.constant dense<0.000000e+00> : vector<256xf32>
    %61 = vector.multi_reduction <add>, %60, %cst_34 [1] : vector<256x128xf32> to vector<256xf32>
    %62 = vector.shape_cast %61 : vector<256xf32> to vector<256x1xf32>
    %cst_35 = arith.constant 1.250000e-01 : f32
    %63 = vector.broadcast %cst_35 : f32 to vector<256x1xf32>
    %64 = arith.mulf %62, %63 : vector<256x1xf32>
    %cst_36 = arith.constant 9.99999974E-6 : f32
    %65 = vector.broadcast %cst_36 : f32 to vector<256x1xf32>
    %66 = arith.addf %64, %65 : vector<256x1xf32>
    %67 = math.rsqrt %66 : vector<256x1xf32>
    %68 = vector.broadcast %67 : vector<256x1xf32> to vector<256x128xf32>
    %69 = arith.mulf %59, %68 : vector<256x128xf32>
    %c0_37 = arith.constant 0 : index
    %c0_38 = arith.constant 0 : index
    %70 = vector.load %arg5[%c0_37, %c0_38] : memref<1x128xf32, #tpu.memory_space<vmem>>, vector<1x128xf32>
    %71 = vector.broadcast %70 : vector<1x128xf32> to vector<256x128xf32>
    %72 = arith.mulf %69, %71 : vector<256x128xf32>
    %c0_39 = arith.constant 0 : index
    %c0_40 = arith.constant 0 : index
    %73 = vector.load %arg6[%c0_39, %c0_40] : memref<1x128xf32, #tpu.memory_space<vmem>>, vector<1x128xf32>
    %74 = vector.broadcast %73 : vector<1x128xf32> to vector<256x128xf32>
    %75 = arith.addf %72, %74 : vector<256x128xf32>
    %c0_41 = arith.constant 0 : index
    %76 = memref.load %arg1[%c0_41] : memref<1xf32, #tpu.memory_space<smem>>
    %cst_42 = arith.constant 0.000000e+00 : f32
    %77 = vector.broadcast %cst_42 : f32 to vector<256x128xf32>
    %78 = arith.cmpf ogt, %75, %77 : vector<256x128xf32>
    %79 = vector.broadcast %76 : f32 to vector<256x128xf32>
    %80 = arith.mulf %79, %75 : vector<256x128xf32>
    %81 = arith.select %78, %75, %80 : vector<256x128xi1>, vector<256x128xf32>
    %c0_43 = arith.constant 0 : index
    %c0_44 = arith.constant 0 : index
    %c0_45 = arith.constant 0 : index
    %82 = vector.load %arg7[%c0_43, %c0_44, %c0_45] : memref<1x256x128xf32, #tpu.memory_space<vmem>>, vector<1x256x128xf32>
    %83 = vector.shape_cast %82 : vector<1x256x128xf32> to vector<256x128xf32>
    %84 = vector.shape_cast %81 : vector<256x128xf32> to vector<1x256x128xf32>
    tpu.vector_store %arg7[%c0_43, %c0_44, %c0_45], %84 {strides = array<i32>} : memref<1x256x128xf32, #tpu.memory_space<vmem>>, vector<1x256x128xf32>,
    return
  }
  func.func @transform_0(%arg0: i32) -> i32 {
    %c0_i32 = arith.constant 0 : i32
    %c0_i32_0 = arith.constant 0 : i32
    return %c0_i32 : i32
  }
  func.func @transform_1(%arg0: i32) -> (i32, i32, i32) {
    %c0_i32 = arith.constant 0 : i32
    %c0_i32_0 = arith.constant 0 : i32
    %c0_i32_1 = arith.constant 0 : i32
    return %arg0, %c0_i32, %c0_i32_0 : i32, i32, i32
  }
  func.func @transform_2(%arg0: i32) -> (i32, i32, i32) {
    %c0_i32 = arith.constant 0 : i32
    %c0_i32_0 = arith.constant 0 : i32
    %c0_i32_1 = arith.constant 0 : i32
    %c0_i32_2 = arith.constant 0 : i32
    return %c0_i32, %c0_i32_0, %c0_i32_1 : i32, i32, i32
  }
  func.func @transform_3(%arg0: i32) -> (i32, i32) {
    %c0_i32 = arith.constant 0 : i32
    %c0_i32_0 = arith.constant 0 : i32
    %c0_i32_1 = arith.constant 0 : i32
    return %c0_i32, %c0_i32_0 : i32, i32
  }
  func.func @transform_4(%arg0: i32) -> (i32, i32) {
    %c0_i32 = arith.constant 0 : i32
    %c0_i32_0 = arith.constant 0 : i32
    %c0_i32_1 = arith.constant 0 : i32
    return %c0_i32, %c0_i32_0 : i32, i32
  }
  func.func @transform_5(%arg0: i32) -> (i32, i32) {
    %c0_i32 = arith.constant 0 : i32
    %c0_i32_0 = arith.constant 0 : i32
    %c0_i32_1 = arith.constant 0 : i32
    return %c0_i32, %c0_i32_0 : i32, i32
  }
  func.func @transform_6(%arg0: i32) -> (i32, i32, i32) {
    %c0_i32 = arith.constant 0 : i32
    %c0_i32_0 = arith.constant 0 : i32
    %c0_i32_1 = arith.constant 0 : i32
    return %arg0, %c0_i32, %c0_i32_0 : i32, i32, i32
  }
}

</mosaic_0001>

<llo_original>
// kernel: conv_block_forward_nhwc.1
$region0: #{conv_block_forward_nhwc.1}
  #allocation0 [shape = 'u32[]', space=smem, size = 0x4, offset = 0x4, fixed_abs, tag = 'smem constant byte address 0x4 - core index']
  #allocation1 [shape = 'u32[72,128]{1,0:T(1,128)}', space=vmem, size = 0x9000, scoped, tag = 'internal scratch']
  #allocation2 [shape = 'f32[1]{0:T(128)S(6)}', space=smem, size = 0x200, scoped, tag = 'scoped memory for conv_block_forward_nhwc.1']
  %s0 = inlined_call_operand.<no memory space> [shape: f32[1], index: 0, kind: input, shape index: {}]
  %s1 = inlined_call_operand.vmem [shape: f32[2,296,4], index: 1, kind: input, shape index: {}]
  %s2 = inlined_call_operand.vmem [shape: f32[9,4,128], index: 2, kind: input, shape index: {}]
  %s3 = inlined_call_operand.vmem [shape: f32[1,128], index: 3, kind: input, shape index: {}]
  %s4 = inlined_call_operand.vmem [shape: f32[1,128], index: 4, kind: input, shape index: {}]
  %s5 = inlined_call_operand.vmem [shape: f32[1,128], index: 5, kind: input, shape index: {}]
  %s6 = inlined_call_operand.vmem [shape: f32[2,256,128], index: 6, kind: output, shape index: {}]
  %s7 = sld [smem:[#allocation0]]
  $region57: #{conv_block_forward_nhwc.1} parent=0
    _
  %s9 = ssub.s32 1, %s7
  %s10 = scalar_select 0, %s9, %s7
  %11 = sst [smem:[#allocation2]] %s0
  loop: start=0, step=1, limit=4
  $region2: #{conv_block_forward_nhwc.1} parent=0 // loop_pre_header
    _
  $region3: #{conv_block_forward_nhwc.1} parent=0 // loop_header
    %s13 = sphi 0, %s17
    %p14 = scmp.ge.s32.totalorder %s13, 4
    %s21 = sphi 0, %s21
    %s23 = sphi 0, %s21
    %s24 = sphi 0, %s23
    %s38 = sphi 0, %s24
    %s44 = sphi 0, %s46
    %s47 = sphi 0, %s44
    %s48 = sphi 0, %s47
    %s64 = sphi 0, %s48
    %s68 = sphi 0, %s68
    %s70 = sphi 0, %s68
    %s71 = sphi 0, %s70
    %s85 = sphi 0, %s71
    %s89 = sphi 0, %s89
    %s91 = sphi 0, %s89
    %s92 = sphi 0, %s91
    %s106 = sphi 0, %s92
    %s110 = sphi 0, %s110
    %s112 = sphi 0, %s110
    %s113 = sphi 0, %s112
    %s127 = sphi 0, %s113
    %s131 = sphi 0, %s131
    %s133 = sphi 0, %s131
    %s134 = sphi 0, %s133
    %s148 = sphi 0, %s134
    %s154 = sphi 0, %s156
    %s157 = sphi 0, %s154
    %s158 = sphi 0, %s157
    %s174 = sphi 0, %s158
  $region4: #{conv_block_forward_nhwc.1} parent=0 // loop_header_branch
    %16 = sbr.rel (%p14) target = $region8
  $region5: #{conv_block_forward_nhwc.1} parent=0 // loop_body
    %s18 = ssub.s32 %s13, 1
    %s19 = ssub.s32 %s13, 2
    %s20 = sadd.s32 %s13, 1
    %s22 = sadd.s32 %s21, 1
    %p25 = scmp.eq.s32.totalorder %s13, 1
    %p26 = scmp.ne.s32.totalorder %s21, %s23
    %p27 = scmp.eq.s32.totalorder %s13, 0
    %p28 = por %p26, %p27
    %p29 = scmp.ne.s32.totalorder %s21, %s23
    %p30 = scmp.eq.s32.totalorder %s18, 1
    %p31 = por %p29, %p30
    %p32 = scmp.ne.s32.totalorder %s23, %s24
    %p33 = scmp.eq.s32.totalorder %s18, 0
    %p34 = por %p32, %p33
    %p35 = scmp.ne.s32.totalorder %s23, %s24
    %p36 = scmp.eq.s32.totalorder %s19, 1
    %p37 = por %p35, %p36
    %p39 = scmp.ne.s32.totalorder %s24, %s38
    %p40 = scmp.eq.s32.totalorder %s19, 0
    %p41 = por %p39, %p40
    %s42 = ssub.s32 %s13, %s20
    %p43 = scmp.eq.s32.totalorder %s42, 0
    %s45 = sadd.s32 %s44, 1
    %s46 = scalar_select %p43, %s44, %s45
    %p49 = pneg %p43
    %p50 = scmp.eq.s32.totalorder %s13, 1
    %p51 = por %p49, %p50
    %p52 = scmp.ne.s32.totalorder %s44, %s47
    %p53 = scmp.eq.s32.totalorder %s13, 0
    %p54 = por %p52, %p53
    %p55 = scmp.ne.s32.totalorder %s44, %s47
    %p56 = scmp.eq.s32.totalorder %s18, 1
    %p57 = por %p55, %p56
    %p58 = scmp.ne.s32.totalorder %s47, %s48
    %p59 = scmp.eq.s32.totalorder %s18, 0
    %p60 = por %p58, %p59
    %p61 = scmp.ne.s32.totalorder %s47, %s48
    %p62 = scmp.eq.s32.totalorder %s19, 1
    %p63 = por %p61, %p62
    %p65 = scmp.ne.s32.totalorder %s48, %s64
    %p66 = scmp.eq.s32.totalorder %s19, 0
    %p67 = por %p65, %p66
    %s69 = sadd.s32 %s68, 1
    %p72 = scmp.eq.s32.totalorder %s13, 1
    %p73 = scmp.ne.s32.totalorder %s68, %s70
    %p74 = scmp.eq.s32.totalorder %s13, 0
    %p75 = por %p73, %p74
    %p76 = scmp.ne.s32.totalorder %s68, %s70
    %p77 = scmp.eq.s32.totalorder %s18, 1
    %p78 = por %p76, %p77
    %p79 = scmp.ne.s32.totalorder %s70, %s71
    %p80 = scmp.eq.s32.totalorder %s18, 0
    %p81 = por %p79, %p80
    %p82 = scmp.ne.s32.totalorder %s70, %s71
    %p83 = scmp.eq.s32.totalorder %s19, 1
    %p84 = por %p82, %p83
    %p86 = scmp.ne.s32.totalorder %s71, %s85
    %p87 = scmp.eq.s32.totalorder %s19, 0
    %p88 = por %p86, %p87
    %s90 = sadd.s32 %s89, 1
    %p93 = scmp.eq.s32.totalorder %s13, 1
    %p94 = scmp.ne.s32.totalorder %s89, %s91
    %p95 = scmp.eq.s32.totalorder %s13, 0
    %p96 = por %p94, %p95
    %p97 = scmp.ne.s32.totalorder %s89, %s91
    %p98 = scmp.eq.s32.totalorder %s18, 1
    %p99 = por %p97, %p98
    %p100 = scmp.ne.s32.totalorder %s91, %s92
    %p101 = scmp.eq.s32.totalorder %s18, 0
    %p102 = por %p100, %p101
    %p103 = scmp.ne.s32.totalorder %s91, %s92
    %p104 = scmp.eq.s32.totalorder %s19, 1
    %p105 = por %p103, %p104
    %p107 = scmp.ne.s32.totalorder %s92, %s106
    %p108 = scmp.eq.s32.totalorder %s19, 0
    %p109 = por %p107, %p108
    %s111 = sadd.s32 %s110, 1
    %p114 = scmp.eq.s32.totalorder %s13, 1
    %p115 = scmp.ne.s32.totalorder %s110, %s112
    %p116 = scmp.eq.s32.totalorder %s13, 0
    %p117 = por %p115, %p116
    %p118 = scmp.ne.s32.totalorder %s110, %s112
    %p119 = scmp.eq.s32.totalorder %s18, 1
    %p120 = por %p118, %p119
    %p121 = scmp.ne.s32.totalorder %s112, %s113
    %p122 = scmp.eq.s32.totalorder %s18, 0
    %p123 = por %p121, %p122
    %p124 = scmp.ne.s32.totalorder %s112, %s113
    %p125 = scmp.eq.s32.totalorder %s19, 1
    %p126 = por %p124, %p125
    %p128 = scmp.ne.s32.totalorder %s113, %s127
    %p129 = scmp.eq.s32.totalorder %s19, 0
    %p130 = por %p128, %p129
    %s132 = sadd.s32 %s131, 1
    %p135 = scmp.eq.s32.totalorder %s13, 1
    %p136 = scmp.ne.s32.totalorder %s131, %s133
    %p137 = scmp.eq.s32.totalorder %s13, 0
    %p138 = por %p136, %p137
    %p139 = scmp.ne.s32.totalorder %s131, %s133
    %p140 = scmp.eq.s32.totalorder %s18, 1
    %p141 = por %p139, %p140
    %p142 = scmp.ne.s32.totalorder %s133, %s134
    %p143 = scmp.eq.s32.totalorder %s18, 0
    %p144 = por %p142, %p143
    %p145 = scmp.ne.s32.totalorder %s133, %s134
    %p146 = scmp.eq.s32.totalorder %s19, 1
    %p147 = por %p145, %p146
    %p149 = scmp.ne.s32.totalorder %s134, %s148
    %p150 = scmp.eq.s32.totalorder %s19, 0
    %p151 = por %p149, %p150
    %s152 = ssub.s32 %s13, %s20
    %p153 = scmp.eq.s32.totalorder %s152, 0
    %s155 = sadd.s32 %s154, 1
    %s156 = scalar_select %p153, %s154, %s155
    %p159 = pneg %p153
    %p160 = scmp.eq.s32.totalorder %s13, 1
    %p161 = por %p159, %p160
    %p162 = scmp.ne.s32.totalorder %s154, %s157
    %p163 = scmp.eq.s32.totalorder %s13, 0
    %p164 = por %p162, %p163
    %p165 = scmp.ne.s32.totalorder %s154, %s157
    %p166 = scmp.eq.s32.totalorder %s18, 1
    %p167 = por %p165, %p166
    %p168 = scmp.ne.s32.totalorder %s157, %s158
    %p169 = scmp.eq.s32.totalorder %s18, 0
    %p170 = por %p168, %p169
    %p171 = scmp.ne.s32.totalorder %s157, %s158
    %p172 = scmp.eq.s32.totalorder %s19, 1
    %p173 = por %p171, %p172
    %p175 = scmp.ne.s32.totalorder %s158, %s174
    %p176 = scmp.eq.s32.totalorder %s19, 0
    %p177 = por %p175, %p176
    %p178 = scmp.le.s32.totalorder 1, %s13
    %p179 = scmp.lt.s32.totalorder %s13, 3
    %p180 = pnand %p178, %p179
    %p181 = pneg %p180
    // Predicated region
    $region9: #{conv_block_forward_nhwc.1} parent=5 // pred_check
      _
    $region10: #{conv_block_forward_nhwc.1} parent=5 // pred_check_branch
      %183 = sbr.rel (%p180) target = $region12
    $region11: #{conv_block_forward_nhwc.1} parent=5 // pred_region
      %s184 = ssub.s32 %s13, 1
      // Predicated region
      $region13: #{conv_block_forward_nhwc.1} parent=11 // pred_check
        %p185 = pneg %p34
      $region14: #{conv_block_forward_nhwc.1} parent=11 // pred_check_branch
        %187 = sbr.rel (%p185) target = $region16
      $region15: #{conv_block_forward_nhwc.1} parent=11 // pred_region
        _
      $region16: #{conv_block_forward_nhwc.1} parent=11 // pred_fallthru
        _
      // Predicated region
      $region17: #{conv_block_forward_nhwc.1} parent=11 // pred_check
        %p188 = pneg %p81
      $region18: #{conv_block_forward_nhwc.1} parent=11 // pred_check_branch
        %190 = sbr.rel (%p188) target = $region20
      $region19: #{conv_block_forward_nhwc.1} parent=11 // pred_region
        _
      $region20: #{conv_block_forward_nhwc.1} parent=11 // pred_fallthru
        _
      // Predicated region
      $region21: #{conv_block_forward_nhwc.1} parent=11 // pred_check
        %p191 = pneg %p102
      $region22: #{conv_block_forward_nhwc.1} parent=11 // pred_check_branch
        %193 = sbr.rel (%p191) target = $region24
      $region23: #{conv_block_forward_nhwc.1} parent=11 // pred_region
        _
      $region24: #{conv_block_forward_nhwc.1} parent=11 // pred_fallthru
        _
      // Predicated region
      $region25: #{conv_block_forward_nhwc.1} parent=11 // pred_check
        %p194 = pneg %p123
      $region26: #{conv_block_forward_nhwc.1} parent=11 // pred_check_branch
        %196 = sbr.rel (%p194) target = $region28
      $region27: #{conv_block_forward_nhwc.1} parent=11 // pred_region
        _
      $region28: #{conv_block_forward_nhwc.1} parent=11 // pred_fallthru
        _
      // Predicated region
      $region29: #{conv_block_forward_nhwc.1} parent=11 // pred_check
        %p197 = pneg %p144
      $region30: #{conv_block_forward_nhwc.1} parent=11 // pred_check_branch
        %199 = sbr.rel (%p197) target = $region32
      $region31: #{conv_block_forward_nhwc.1} parent=11 // pred_region
        _
      $region32: #{conv_block_forward_nhwc.1} parent=11 // pred_fallthru
        _
    $region12: #{conv_block_forward_nhwc.1} parent=5 // pred_fallthru
      _
    %p200 = scmp.lt.s32.totalorder %s13, 2
    // Predicated region
    $region33: #{conv_block_forward_nhwc.1} parent=5 // pred_check
      %p201 = pneg %p200
    $region34: #{conv_block_forward_nhwc.1} parent=5 // pred_check_branch
      %203 = sbr.rel (%p201) target = $region36
    $region35: #{conv_block_forward_nhwc.1} parent=5 // pred_region
      // Predicated region
      $region37: #{conv_block_forward_nhwc.1} parent=35 // pred_check
        %p204 = pneg %p54
      $region38: #{conv_block_forward_nhwc.1} parent=35 // pred_check_branch
        %206 = sbr.rel (%p204) target = $region40
      $region39: #{conv_block_forward_nhwc.1} parent=35 // pred_region
        %p207 = scmp.lt.s32.totalorder %s13, 1
        %s208 = scalar_select %p207, %s13, 1
        %s209 = smul.addr %s208, 37
        %s210 = smul.addr %s209, 8
        %s211 = scalar_lea.vmem %s1, %s210
      $region40: #{conv_block_forward_nhwc.1} parent=35 // pred_fallthru
        _
    $region36: #{conv_block_forward_nhwc.1} parent=5 // pred_fallthru
      _
    %p212 = scmp.le.s32.totalorder 1, %s13
    %p213 = scmp.lt.s32.totalorder %s13, 3
    %p214 = pnand %p212, %p213
    %p215 = pneg %p214
    // Predicated region
    $region41: #{conv_block_forward_nhwc.1} parent=5 // pred_check
      _
    $region42: #{conv_block_forward_nhwc.1} parent=5 // pred_check_branch
      %217 = sbr.rel (%p214) target = $region44
    $region43: #{conv_block_forward_nhwc.1} parent=5 // pred_region
      %s218 = ssub.s32 %s13, 1
      %p219 = pneg %p34
      %p220 = pneg %p31
      %p221 = scmp.lt.s32.totalorder %s18, 1
      %s222 = scalar_select %p221, %s18, 1
      %s223 = smul.addr %s222, 37
      %s224 = smul.addr %s223, 8
      %s225 = scalar_lea.vmem %s1, %s224
      %p226 = pneg %p60
      %p227 = pneg %p57
      %p228 = pneg %p81
      %p229 = pneg %p78
      %p230 = pneg %p102
      %p231 = pneg %p99
      %p232 = pneg %p123
      %p233 = pneg %p120
      %p234 = pneg %p144
      %p235 = pneg %p141
      %p236 = pneg %p170
      %p237 = pneg %p167
      %p238 = scmp.lt.s32.totalorder %s18, 1
      %s239 = scalar_select %p238, %s18, 1
      %s240 = smul.addr %s239, 32
      %s241 = smul.addr %s240, 8
      %s242 = scalar_lea.vmem %s6, %s241
      %p243 = scmp.lt.s32.totalorder %s18, 1
      %s244 = scalar_select %p243, %s18, 1
      %s245 = smul.addr %s244, 37
      %s246 = smul.addr %s245, 8
      %s247 = scalar_lea.vmem %s1, %s246
      %p248 = scmp.lt.s32.totalorder %s18, 1
      %s249 = scalar_select %p248, %s18, 1
      %s250 = smul.addr %s249, 32
      %s251 = smul.addr %s250, 8
      %s252 = scalar_lea.vmem %s6, %s251
      %v253 = vld [vmem:[%s247] sm:$0xff]
      %v254 = vld [vmem:[%s247 + $0x8] sm:$0xff]
      %v255 = vld [vmem:[%s247 + $0x10] sm:$0xff]
      %v256 = vld [vmem:[%s247 + $0x18] sm:$0xff]
      %v257 = vld [vmem:[%s247 + $0x20] sm:$0xff]
      %v258 = vld [vmem:[%s247 + $0x28] sm:$0xff]
      %v259 = vld [vmem:[%s247 + $0x30] sm:$0xff]
      %v260 = vld [vmem:[%s247 + $0x38] sm:$0xff]
      %v261 = vld [vmem:[%s247 + $0x40] sm:$0xff]
      %v262 = vld [vmem:[%s247 + $0x48] sm:$0xff]
      %v263 = vld [vmem:[%s247 + $0x50] sm:$0xff]
      %v264 = vld [vmem:[%s247 + $0x58] sm:$0xff]
      %v265 = vld [vmem:[%s247 + $0x60] sm:$0xff]
      %v266 = vld [vmem:[%s247 + $0x68] sm:$0xff]
      %v267 = vld [vmem:[%s247 + $0x70] sm:$0xff]
      %v268 = vld [vmem:[%s247 + $0x78] sm:$0xff]
      %v269 = vld [vmem:[%s247 + $0x80] sm:$0xff]
      %v270 = vld [vmem:[%s247 + $0x88] sm:$0xff]
      %v271 = vld [vmem:[%s247 + $0x90] sm:$0xff]
      %v272 = vld [vmem:[%s247 + $0x98] sm:$0xff]
      %v273 = vld [vmem:[%s247 + $0xa0] sm:$0xff]
      %v274 = vld [vmem:[%s247 + $0xa8] sm:$0xff]
      %v275 = vld [vmem:[%s247 + $0xb0] sm:$0xff]
      %v276 = vld [vmem:[%s247 + $0xb8] sm:$0xff]
      %v277 = vld [vmem:[%s247 + $0xc0] sm:$0xff]
      %v278 = vld [vmem:[%s247 + $0xc8] sm:$0xff]
      %v279 = vld [vmem:[%s247 + $0xd0] sm:$0xff]
      %v280 = vld [vmem:[%s247 + $0xd8] sm:$0xff]
      %v281 = vld [vmem:[%s247 + $0xe0] sm:$0xff]
      %v282 = vld [vmem:[%s247 + $0xe8] sm:$0xff]
      %v283 = vld [vmem:[%s247 + $0xf0] sm:$0xff]
      %v284 = vld [vmem:[%s247 + $0xf8] sm:$0xff]
      %v285 = vld [vmem:[%s247 + $0x100] sm:$0xff]
      %v286 = vld [vmem:[%s247 + $0x108] sm:$0xff]
      %v287 = vld [vmem:[%s247 + $0x110] sm:$0xff]
      %v288 = vld [vmem:[%s247 + $0x118] sm:$0xff]
      %v289 = vld [vmem:[%s247 + $0x120] sm:$0xff]
      %v290 = vld [vmem:[%s2] sm:$0xf]
      %s291 = scalar_lea.vmem %s2, 4
      %v292 = vld [vmem:[%s291] sm:$0xf]
      %vm326 = vcmask 1046528
      %v327 = vrot.slane %v253, 1
      %v328 = vrot.slane %v254, 1
      %v329 = vsel %vm326, %v327, %v328
      %v330 = vrot.slane %v255, 1
      %v331 = vsel %vm326, %v328, %v330
      %v332 = vrot.slane %v256, 1
      %v333 = vsel %vm326, %v330, %v332
      %v334 = vrot.slane %v257, 1
      %v335 = vsel %vm326, %v332, %v334
      %v336 = vrot.slane %v258, 1
      %v337 = vsel %vm326, %v334, %v336
      %v338 = vrot.slane %v259, 1
      %v339 = vsel %vm326, %v336, %v338
      %v340 = vrot.slane %v260, 1
      %v341 = vsel %vm326, %v338, %v340
      %v342 = vrot.slane %v261, 1
      %v343 = vsel %vm326, %v340, %v342
      %v344 = vrot.slane %v262, 1
      %v345 = vsel %vm326, %v342, %v344
      %v346 = vrot.slane %v263, 1
      %v347 = vsel %vm326, %v344, %v346
      %v348 = vrot.slane %v264, 1
      %v349 = vsel %vm326, %v346, %v348
      %v350 = vrot.slane %v265, 1
      %v351 = vsel %vm326, %v348, %v350
      %v352 = vrot.slane %v266, 1
      %v353 = vsel %vm326, %v350, %v352
      %v354 = vrot.slane %v267, 1
      %v355 = vsel %vm326, %v352, %v354
      %v356 = vrot.slane %v268, 1
      %v357 = vsel %vm326, %v354, %v356
      %v358 = vrot.slane %v269, 1
      %v359 = vsel %vm326, %v356, %v358
      %v360 = vrot.slane %v270, 1
      %v361 = vsel %vm326, %v358, %v360
      %v362 = vrot.slane %v271, 1
      %v363 = vsel %vm326, %v360, %v362
      %v364 = vrot.slane %v272, 1
      %v365 = vsel %vm326, %v362, %v364
      %v366 = vrot.slane %v273, 1
      %v367 = vsel %vm326, %v364, %v366
      %v368 = vrot.slane %v274, 1
      %v369 = vsel %vm326, %v366, %v368
      %v370 = vrot.slane %v275, 1
      %v371 = vsel %vm326, %v368, %v370
      %v372 = vrot.slane %v276, 1
      %v373 = vsel %vm326, %v370, %v372
      %v374 = vrot.slane %v277, 1
      %v375 = vsel %vm326, %v372, %v374
      %v376 = vrot.slane %v278, 1
      %v377 = vsel %vm326, %v374, %v376
      %v378 = vrot.slane %v279, 1
      %v379 = vsel %vm326, %v376, %v378
      %v380 = vrot.slane %v280, 1
      %v381 = vsel %vm326, %v378, %v380
      %v382 = vrot.slane %v281, 1
      %v383 = vsel %vm326, %v380, %v382
      %v384 = vrot.slane %v282, 1
      %v385 = vsel %vm326, %v382, %v384
      %v386 = vrot.slane %v283, 1
      %v387 = vsel %vm326, %v384, %v386
      %v388 = vrot.slane %v284, 1
      %v389 = vsel %vm326, %v386, %v388
      %v390 = vrot.slane %v285, 1
      %v391 = vsel %vm326, %v388, %v390
      %vm392 = vcmask 31744
      %v393 = vsel %vm392, %v329, 0
      %v395 = vsel %vm392, %v331, 0
      %v397 = vsel %vm392, %v333, 0
      %v399 = vsel %vm392, %v335, 0
      %v401 = vsel %vm392, %v337, 0
      %v403 = vsel %vm392, %v339, 0
      %v405 = vsel %vm392, %v341, 0
      %v407 = vsel %vm392, %v343, 0
      %v409 = vsel %vm392, %v345, 0
      %v411 = vsel %vm392, %v347, 0
      %v413 = vsel %vm392, %v349, 0
      %v415 = vsel %vm392, %v351, 0
      %v417 = vsel %vm392, %v353, 0
      %v419 = vsel %vm392, %v355, 0
      %v421 = vsel %vm392, %v357, 0
      %v423 = vsel %vm392, %v359, 0
      %v425 = vsel %vm392, %v361, 0
      %v427 = vsel %vm392, %v363, 0
      %v429 = vsel %vm392, %v365, 0
      %v431 = vsel %vm392, %v367, 0
      %v433 = vsel %vm392, %v369, 0
      %v435 = vsel %vm392, %v371, 0
      %v437 = vsel %vm392, %v373, 0
      %v439 = vsel %vm392, %v375, 0
      %v441 = vsel %vm392, %v377, 0
      %v443 = vsel %vm392, %v379, 0
      %v445 = vsel %vm392, %v381, 0
      %v447 = vsel %vm392, %v383, 0
      %v449 = vsel %vm392, %v385, 0
      %v451 = vsel %vm392, %v387, 0
      %v453 = vsel %vm392, %v389, 0
      %v455 = vsel %vm392, %v391, 0
      %vm457 = vcmask 1043456
      %v459 = vsel %vm457, %v292, 0
      %461 = vmatpush.msra.mxu0 0.0
      %462 = vmatpush.msra.mxu0 0.0
      %463 = vmatpush.msra.mxu0 0.0
      %464 = vmatpush.msra.mxu0 0.0
      %465 = vmatpush.msra.mxu0 0.0
      %466 = vmatpush.msra.mxu0 0.0
      %467 = vmatpush.msra.mxu0 0.0
      %468 = vmatpush.msra.mxu0 0.0
      %469 = vmatpush.msra.mxu0 0.0
      %470 = vmatpush.msra.mxu0 0.0
      %471 = vmatpush.msra.mxu0 0.0
      %472 = vmatpush.msra.mxu0 0.0
      %473 = vmatpush.msra.mxu0 0.0
      %474 = vmatpush.msra.mxu0 0.0
      %475 = vmatpush.msra.mxu0 0.0
      %476 = vmatpush.msra.mxu0 %v459
      %477 = vmatmul.f32.gmra.mxu0 %v393
      %v478 = vpop.f32.mrf.mxu0
      %v479 = vadd.f32 0.0, %v478
      %480 = vmatmul.f32.gmra.mxu0 %v395
      %v481 = vpop.f32.mrf.mxu0
      %v482 = vadd.f32 0.0, %v481
      %483 = vmatmul.f32.gmra.mxu0 %v397
      %v484 = vpop.f32.mrf.mxu0
      %v485 = vadd.f32 0.0, %v484
      %486 = vmatmul.f32.gmra.mxu0 %v399
      %v487 = vpop.f32.mrf.mxu0
      %v488 = vadd.f32 0.0, %v487
      %489 = vmatmul.f32.gmra.mxu0 %v401
      %v490 = vpop.f32.mrf.mxu0
      %v491 = vadd.f32 0.0, %v490
      %492 = vmatmul.f32.gmra.mxu0 %v403
      %v493 = vpop.f32.mrf.mxu0
      %v494 = vadd.f32 0.0, %v493
      %495 = vmatmul.f32.gmra.mxu0 %v405
      %v496 = vpop.f32.mrf.mxu0
      %v497 = vadd.f32 0.0, %v496
      %498 = vmatmul.f32.gmra.mxu0 %v407
      %v499 = vpop.f32.mrf.mxu0
      %v500 = vadd.f32 0.0, %v499
      %501 = vmatmul.f32.gmra.mxu0 %v409
      %v502 = vpop.f32.mrf.mxu0
      %v503 = vadd.f32 0.0, %v502
      %504 = vmatmul.f32.gmra.mxu0 %v411
      %v505 = vpop.f32.mrf.mxu0
      %v506 = vadd.f32 0.0, %v505
      %507 = vmatmul.f32.gmra.mxu0 %v413
      %v508 = vpop.f32.mrf.mxu0
      %v509 = vadd.f32 0.0, %v508
      %510 = vmatmul.f32.gmra.mxu0 %v415
      %v511 = vpop.f32.mrf.mxu0
      %v512 = vadd.f32 0.0, %v511
      %513 = vmatmul.f32.gmra.mxu0 %v417
      %v514 = vpop.f32.mrf.mxu0
      %v515 = vadd.f32 0.0, %v514
      %516 = vmatmul.f32.gmra.mxu0 %v419
      %v517 = vpop.f32.mrf.mxu0
      %v518 = vadd.f32 0.0, %v517
      %519 = vmatmul.f32.gmra.mxu0 %v421
      %v520 = vpop.f32.mrf.mxu0
      %v521 = vadd.f32 0.0, %v520
      %522 = vmatmul.f32.gmra.mxu0 %v423
      %v523 = vpop.f32.mrf.mxu0
      %v524 = vadd.f32 0.0, %v523
      %525 = vmatmul.f32.gmra.mxu0 %v425
      %v526 = vpop.f32.mrf.mxu0
      %v527 = vadd.f32 0.0, %v526
      %528 = vmatmul.f32.gmra.mxu0 %v427
      %v529 = vpop.f32.mrf.mxu0
      %v530 = vadd.f32 0.0, %v529
      %531 = vmatmul.f32.gmra.mxu0 %v429
      %v532 = vpop.f32.mrf.mxu0
      %v533 = vadd.f32 0.0, %v532
      %534 = vmatmul.f32.gmra.mxu0 %v431
      %v535 = vpop.f32.mrf.mxu0
      %v536 = vadd.f32 0.0, %v535
      %537 = vmatmul.f32.gmra.mxu0 %v433
      %v538 = vpop.f32.mrf.mxu0
      %v539 = vadd.f32 0.0, %v538
      %540 = vmatmul.f32.gmra.mxu0 %v435
      %v541 = vpop.f32.mrf.mxu0
      %v542 = vadd.f32 0.0, %v541
      %543 = vmatmul.f32.gmra.mxu0 %v437
      %v544 = vpop.f32.mrf.mxu0
      %v545 = vadd.f32 0.0, %v544
      %546 = vmatmul.f32.gmra.mxu0 %v439
      %v547 = vpop.f32.mrf.mxu0
      %v548 = vadd.f32 0.0, %v547
      %549 = vmatmul.f32.gmra.mxu0 %v441
      %v550 = vpop.f32.mrf.mxu0
      %v551 = vadd.f32 0.0, %v550
      %552 = vmatmul.f32.gmra.mxu0 %v443
      %v553 = vpop.f32.mrf.mxu0
      %v554 = vadd.f32 0.0, %v553
      %555 = vmatmul.f32.gmra.mxu0 %v445
      %v556 = vpop.f32.mrf.mxu0
      %v557 = vadd.f32 0.0, %v556
      %558 = vmatmul.f32.gmra.mxu0 %v447
      %v559 = vpop.f32.mrf.mxu0
      %v560 = vadd.f32 0.0, %v559
      %561 = vmatmul.f32.gmra.mxu0 %v449
      %v562 = vpop.f32.mrf.mxu0
      %v563 = vadd.f32 0.0, %v562
      %564 = vmatmul.f32.gmra.mxu0 %v451
      %v565 = vpop.f32.mrf.mxu0
      %v566 = vadd.f32 0.0, %v565
      %567 = vmatmul.f32.gmra.mxu0 %v453
      %v568 = vpop.f32.mrf.mxu0
      %v569 = vadd.f32 0.0, %v568
      %570 = vmatmul.f32.gmra.mxu0 %v455
      %v571 = vpop.f32.mrf.mxu0
      %v572 = vadd.f32 0.0, %v571
      %573 = vdwg.mxu0
      %v574 = vsel %vm392, %v253, 0
      %v576 = vsel %vm392, %v254, 0
      %v578 = vsel %vm392, %v255, 0
      %v580 = vsel %vm392, %v256, 0
      %v582 = vsel %vm392, %v257, 0
      %v584 = vsel %vm392, %v258, 0
      %v586 = vsel %vm392, %v259, 0
      %v588 = vsel %vm392, %v260, 0
      %v590 = vsel %vm392, %v261, 0
      %v592 = vsel %vm392, %v262, 0
      %v594 = vsel %vm392, %v263, 0
      %v596 = vsel %vm392, %v264, 0
      %v598 = vsel %vm392, %v265, 0
      %v600 = vsel %vm392, %v266, 0
      %v602 = vsel %vm392, %v267, 0
      %v604 = vsel %vm392, %v268, 0
      %v606 = vsel %vm392, %v269, 0
      %v608 = vsel %vm392, %v270, 0
      %v610 = vsel %vm392, %v271, 0
      %v612 = vsel %vm392, %v272, 0
      %v614 = vsel %vm392, %v273, 0
      %v616 = vsel %vm392, %v274, 0
      %v618 = vsel %vm392, %v275, 0
      %v620 = vsel %vm392, %v276, 0
      %v622 = vsel %vm392, %v277, 0
      %v624 = vsel %vm392, %v278, 0
      %v626 = vsel %vm392, %v279, 0
      %v628 = vsel %vm392, %v280, 0
      %v630 = vsel %vm392, %v281, 0
      %v632 = vsel %vm392, %v282, 0
      %v634 = vsel %vm392, %v283, 0
      %v636 = vsel %vm392, %v284, 0
      %v639 = vsel %vm457, %v290, 0
      %641 = vmatpush.msra.mxu0 0.0
      %642 = vmatpush.msra.mxu0 0.0
      %643 = vmatpush.msra.mxu0 0.0
      %644 = vmatpush.msra.mxu0 0.0
      %645 = vmatpush.msra.mxu0 0.0
      %646 = vmatpush.msra.mxu0 0.0
      %647 = vmatpush.msra.mxu0 0.0
      %648 = vmatpush.msra.mxu0 0.0
      %649 = vmatpush.msra.mxu0 0.0
      %650 = vmatpush.msra.mxu0 0.0
      %651 = vmatpush.msra.mxu0 0.0
      %652 = vmatpush.msra.mxu0 0.0
      %653 = vmatpush.msra.mxu0 0.0
      %654 = vmatpush.msra.mxu0 0.0
      %655 = vmatpush.msra.mxu0 0.0
      %656 = vmatpush.msra.mxu0 %v639
      %657 = vmatmul.f32.gmra.mxu0 %v574
      %v658 = vpop.f32.mrf.mxu0
      %v659 = vadd.f32 %v479, %v658
      %660 = vmatmul.f32.gmra.mxu0 %v576
      %v661 = vpop.f32.mrf.mxu0
      %v662 = vadd.f32 %v482, %v661
      %663 = vmatmul.f32.gmra.mxu0 %v578
      %v664 = vpop.f32.mrf.mxu0
      %v665 = vadd.f32 %v485, %v664
      %666 = vmatmul.f32.gmra.mxu0 %v580
      %v667 = vpop.f32.mrf.mxu0
      %v668 = vadd.f32 %v488, %v667
      %669 = vmatmul.f32.gmra.mxu0 %v582
      %v670 = vpop.f32.mrf.mxu0
      %v671 = vadd.f32 %v491, %v670
      %672 = vmatmul.f32.gmra.mxu0 %v584
      %v673 = vpop.f32.mrf.mxu0
      %v674 = vadd.f32 %v494, %v673
      %675 = vmatmul.f32.gmra.mxu0 %v586
      %v676 = vpop.f32.mrf.mxu0
      %v677 = vadd.f32 %v497, %v676
      %678 = vmatmul.f32.gmra.mxu0 %v588
      %v679 = vpop.f32.mrf.mxu0
      %v680 = vadd.f32 %v500, %v679
      %681 = vmatmul.f32.gmra.mxu0 %v590
      %v682 = vpop.f32.mrf.mxu0
      %v683 = vadd.f32 %v503, %v682
      %684 = vmatmul.f32.gmra.mxu0 %v592
      %v685 = vpop.f32.mrf.mxu0
      %v686 = vadd.f32 %v506, %v685
      %687 = vmatmul.f32.gmra.mxu0 %v594
      %v688 = vpop.f32.mrf.mxu0
      %v689 = vadd.f32 %v509, %v688
      %690 = vmatmul.f32.gmra.mxu0 %v596
      %v691 = vpop.f32.mrf.mxu0
      %v692 = vadd.f32 %v512, %v691
      %693 = vmatmul.f32.gmra.mxu0 %v598
      %v694 = vpop.f32.mrf.mxu0
      %v695 = vadd.f32 %v515, %v694
      %696 = vmatmul.f32.gmra.mxu0 %v600
      %v697 = vpop.f32.mrf.mxu0
      %v698 = vadd.f32 %v518, %v697
      %699 = vmatmul.f32.gmra.mxu0 %v602
      %v700 = vpop.f32.mrf.mxu0
      %v701 = vadd.f32 %v521, %v700
      %702 = vmatmul.f32.gmra.mxu0 %v604
      %v703 = vpop.f32.mrf.mxu0
      %v704 = vadd.f32 %v524, %v703
      %705 = vmatmul.f32.gmra.mxu0 %v606
      %v706 = vpop.f32.mrf.mxu0
      %v707 = vadd.f32 %v527, %v706
      %708 = vmatmul.f32.gmra.mxu0 %v608
      %v709 = vpop.f32.mrf.mxu0
      %v710 = vadd.f32 %v530, %v709
      %711 = vmatmul.f32.gmra.mxu0 %v610
      %v712 = vpop.f32.mrf.mxu0
      %v713 = vadd.f32 %v533, %v712
      %714 = vmatmul.f32.gmra.mxu0 %v612
      %v715 = vpop.f32.mrf.mxu0
      %v716 = vadd.f32 %v536, %v715
      %717 = vmatmul.f32.gmra.mxu0 %v614
      %v718 = vpop.f32.mrf.mxu0
      %v719 = vadd.f32 %v539, %v718
      %720 = vmatmul.f32.gmra.mxu0 %v616
      %v721 = vpop.f32.mrf.mxu0
      %v722 = vadd.f32 %v542, %v721
      %723 = vmatmul.f32.gmra.mxu0 %v618
      %v724 = vpop.f32.mrf.mxu0
      %v725 = vadd.f32 %v545, %v724
      %726 = vmatmul.f32.gmra.mxu0 %v620
      %v727 = vpop.f32.mrf.mxu0
      %v728 = vadd.f32 %v548, %v727
      %729 = vmatmul.f32.gmra.mxu0 %v622
      %v730 = vpop.f32.mrf.mxu0
      %v731 = vadd.f32 %v551, %v730
      %732 = vmatmul.f32.gmra.mxu0 %v624
      %v733 = vpop.f32.mrf.mxu0
      %v734 = vadd.f32 %v554, %v733
      %735 = vmatmul.f32.gmra.mxu0 %v626
      %v736 = vpop.f32.mrf.mxu0
      %v737 = vadd.f32 %v557, %v736
      %738 = vmatmul.f32.gmra.mxu0 %v628
      %v739 = vpop.f32.mrf.mxu0
      %v740 = vadd.f32 %v560, %v739
      %741 = vmatmul.f32.gmra.mxu0 %v630
      %v742 = vpop.f32.mrf.mxu0
      %v743 = vadd.f32 %v563, %v742
      %744 = vmatmul.f32.gmra.mxu0 %v632
      %v745 = vpop.f32.mrf.mxu0
      %v746 = vadd.f32 %v566, %v745
      %747 = vmatmul.f32.gmra.mxu0 %v634
      %v748 = vpop.f32.mrf.mxu0
      %v749 = vadd.f32 %v569, %v748
      %750 = vmatmul.f32.gmra.mxu0 %v636
      %v751 = vpop.f32.mrf.mxu0
      %v752 = vadd.f32 %v572, %v751
      %753 = vdwg.mxu0
      %s754 = scalar_lea.vmem %s2, 8
      %v755 = vld [vmem:[%s754] sm:$0xf]
      %vm756 = vcmask 1045504
      %v757 = vrot.slane %v253, 2
      %v758 = vrot.slane %v254, 2
      %v759 = vsel %vm756, %v757, %v758
      %v760 = vrot.slane %v255, 2
      %v761 = vsel %vm756, %v758, %v760
      %v762 = vrot.slane %v256, 2
      %v763 = vsel %vm756, %v760, %v762
      %v764 = vrot.slane %v257, 2
      %v765 = vsel %vm756, %v762, %v764
      %v766 = vrot.slane %v258, 2
      %v767 = vsel %vm756, %v764, %v766
      %v768 = vrot.slane %v259, 2
      %v769 = vsel %vm756, %v766, %v768
      %v770 = vrot.slane %v260, 2
      %v771 = vsel %vm756, %v768, %v770
      %v772 = vrot.slane %v261, 2
      %v773 = vsel %vm756, %v770, %v772
      %v774 = vrot.slane %v262, 2
      %v775 = vsel %vm756, %v772, %v774
      %v776 = vrot.slane %v263, 2
      %v777 = vsel %vm756, %v774, %v776
      %v778 = vrot.slane %v264, 2
      %v779 = vsel %vm756, %v776, %v778
      %v780 = vrot.slane %v265, 2
      %v781 = vsel %vm756, %v778, %v780
      %v782 = vrot.slane %v266, 2
      %v783 = vsel %vm756, %v780, %v782
      %v784 = vrot.slane %v267, 2
      %v785 = vsel %vm756, %v782, %v784
      %v786 = vrot.slane %v268, 2
      %v787 = vsel %vm756, %v784, %v786
      %v788 = vrot.slane %v269, 2
      %v789 = vsel %vm756, %v786, %v788
      %v790 = vrot.slane %v270, 2
      %v791 = vsel %vm756, %v788, %v790
      %v792 = vrot.slane %v271, 2
      %v793 = vsel %vm756, %v790, %v792
      %v794 = vrot.slane %v272, 2
      %v795 = vsel %vm756, %v792, %v794
      %v796 = vrot.slane %v273, 2
      %v797 = vsel %vm756, %v794, %v796
      %v798 = vrot.slane %v274, 2
      %v799 = vsel %vm756, %v796, %v798
      %v800 = vrot.slane %v275, 2
      %v801 = vsel %vm756, %v798, %v800
      %v802 = vrot.slane %v276, 2
      %v803 = vsel %vm756, %v800, %v802
      %v804 = vrot.slane %v277, 2
      %v805 = vsel %vm756, %v802, %v804
      %v806 = vrot.slane %v278, 2
      %v807 = vsel %vm756, %v804, %v806
      %v808 = vrot.slane %v279, 2
      %v809 = vsel %vm756, %v806, %v808
      %v810 = vrot.slane %v280, 2
      %v811 = vsel %vm756, %v808, %v810
      %v812 = vrot.slane %v281, 2
      %v813 = vsel %vm756, %v810, %v812
      %v814 = vrot.slane %v282, 2
      %v815 = vsel %vm756, %v812, %v814
      %v816 = vrot.slane %v283, 2
      %v817 = vsel %vm756, %v814, %v816
      %v818 = vrot.slane %v284, 2
      %v819 = vsel %vm756, %v816, %v818
      %v820 = vrot.slane %v285, 2
      %v821 = vsel %vm756, %v818, %v820
      %v822 = vsel %vm392, %v759, 0
      %v824 = vsel %vm392, %v761, 0
      %v826 = vsel %vm392, %v763, 0
      %v828 = vsel %vm392, %v765, 0
      %v830 = vsel %vm392, %v767, 0
      %v832 = vsel %vm392, %v769, 0
      %v834 = vsel %vm392, %v771, 0
      %v836 = vsel %vm392, %v773, 0
      %v838 = vsel %vm392, %v775, 0
      %v840 = vsel %vm392, %v777, 0
      %v842 = vsel %vm392, %v779, 0
      %v844 = vsel %vm392, %v781, 0
      %v846 = vsel %vm392, %v783, 0
      %v848 = vsel %vm392, %v785, 0
      %v850 = vsel %vm392, %v787, 0
      %v852 = vsel %vm392, %v789, 0
      %v854 = vsel %vm392, %v791, 0
      %v856 = vsel %vm392, %v793, 0
      %v858 = vsel %vm392, %v795, 0
      %v860 = vsel %vm392, %v797, 0
      %v862 = vsel %vm392, %v799, 0
      %v864 = vsel %vm392, %v801, 0
      %v866 = vsel %vm392, %v803, 0
      %v868 = vsel %vm392, %v805, 0
      %v870 = vsel %vm392, %v807, 0
      %v872 = vsel %vm392, %v809, 0
      %v874 = vsel %vm392, %v811, 0
      %v876 = vsel %vm392, %v813, 0
      %v878 = vsel %vm392, %v815, 0
      %v880 = vsel %vm392, %v817, 0
      %v882 = vsel %vm392, %v819, 0
      %v884 = vsel %vm392, %v821, 0
      %v887 = vsel %vm457, %v755, 0
      %889 = vmatpush.msra.mxu0 0.0
      %890 = vmatpush.msra.mxu0 0.0
      %891 = vmatpush.msra.mxu0 0.0
      %892 = vmatpush.msra.mxu0 0.0
      %893 = vmatpush.msra.mxu0 0.0
      %894 = vmatpush.msra.mxu0 0.0
      %895 = vmatpush.msra.mxu0 0.0
      %896 = vmatpush.msra.mxu0 0.0
      %897 = vmatpush.msra.mxu0 0.0
      %898 = vmatpush.msra.mxu0 0.0
      %899 = vmatpush.msra.mxu0 0.0
      %900 = vmatpush.msra.mxu0 0.0
      %901 = vmatpush.msra.mxu0 0.0
      %902 = vmatpush.msra.mxu0 0.0
      %903 = vmatpush.msra.mxu0 0.0
      %904 = vmatpush.msra.mxu0 %v887
      %905 = vmatmul.f32.gmra.mxu0 %v822
      %v906 = vpop.f32.mrf.mxu0
      %v907 = vadd.f32 0.0, %v906
      %908 = vmatmul.f32.gmra.mxu0 %v824
      %v909 = vpop.f32.mrf.mxu0
      %v910 = vadd.f32 0.0, %v909
      %911 = vmatmul.f32.gmra.mxu0 %v826
      %v912 = vpop.f32.mrf.mxu0
      %v913 = vadd.f32 0.0, %v912
      %914 = vmatmul.f32.gmra.mxu0 %v828
      %v915 = vpop.f32.mrf.mxu0
      %v916 = vadd.f32 0.0, %v915
      %917 = vmatmul.f32.gmra.mxu0 %v830
      %v918 = vpop.f32.mrf.mxu0
      %v919 = vadd.f32 0.0, %v918
      %920 = vmatmul.f32.gmra.mxu0 %v832
      %v921 = vpop.f32.mrf.mxu0
      %v922 = vadd.f32 0.0, %v921
      %923 = vmatmul.f32.gmra.mxu0 %v834
      %v924 = vpop.f32.mrf.mxu0
      %v925 = vadd.f32 0.0, %v924
      %926 = vmatmul.f32.gmra.mxu0 %v836
      %v927 = vpop.f32.mrf.mxu0
      %v928 = vadd.f32 0.0, %v927
      %929 = vmatmul.f32.gmra.mxu0 %v838
      %v930 = vpop.f32.mrf.mxu0
      %v931 = vadd.f32 0.0, %v930
      %932 = vmatmul.f32.gmra.mxu0 %v840
      %v933 = vpop.f32.mrf.mxu0
      %v934 = vadd.f32 0.0, %v933
      %935 = vmatmul.f32.gmra.mxu0 %v842
      %v936 = vpop.f32.mrf.mxu0
      %v937 = vadd.f32 0.0, %v936
      %938 = vmatmul.f32.gmra.mxu0 %v844
      %v939 = vpop.f32.mrf.mxu0
      %v940 = vadd.f32 0.0, %v939
      %941 = vmatmul.f32.gmra.mxu0 %v846
      %v942 = vpop.f32.mrf.mxu0
      %v943 = vadd.f32 0.0, %v942
      %944 = vmatmul.f32.gmra.mxu0 %v848
      %v945 = vpop.f32.mrf.mxu0
      %v946 = vadd.f32 0.0, %v945
      %947 = vmatmul.f32.gmra.mxu0 %v850
      %v948 = vpop.f32.mrf.mxu0
      %v949 = vadd.f32 0.0, %v948
      %950 = vmatmul.f32.gmra.mxu0 %v852
      %v951 = vpop.f32.mrf.mxu0
      %v952 = vadd.f32 0.0, %v951
      %953 = vmatmul.f32.gmra.mxu0 %v854
      %v954 = vpop.f32.mrf.mxu0
      %v955 = vadd.f32 0.0, %v954
      %956 = vmatmul.f32.gmra.mxu0 %v856
      %v957 = vpop.f32.mrf.mxu0
      %v958 = vadd.f32 0.0, %v957
      %959 = vmatmul.f32.gmra.mxu0 %v858
      %v960 = vpop.f32.mrf.mxu0
      %v961 = vadd.f32 0.0, %v960
      %962 = vmatmul.f32.gmra.mxu0 %v860
      %v963 = vpop.f32.mrf.mxu0
      %v964 = vadd.f32 0.0, %v963
      %965 = vmatmul.f32.gmra.mxu0 %v862
      %v966 = vpop.f32.mrf.mxu0
      %v967 = vadd.f32 0.0, %v966
      %968 = vmatmul.f32.gmra.mxu0 %v864
      %v969 = vpop.f32.mrf.mxu0
      %v970 = vadd.f32 0.0, %v969
      %971 = vmatmul.f32.gmra.mxu0 %v866
      %v972 = vpop.f32.mrf.mxu0
      %v973 = vadd.f32 0.0, %v972
      %974 = vmatmul.f32.gmra.mxu0 %v868
      %v975 = vpop.f32.mrf.mxu0
      %v976 = vadd.f32 0.0, %v975
      %977 = vmatmul.f32.gmra.mxu0 %v870
      %v978 = vpop.f32.mrf.mxu0
      %v979 = vadd.f32 0.0, %v978
      %980 = vmatmul.f32.gmra.mxu0 %v872
      %v981 = vpop.f32.mrf.mxu0
      %v982 = vadd.f32 0.0, %v981
      %983 = vmatmul.f32.gmra.mxu0 %v874
      %v984 = vpop.f32.mrf.mxu0
      %v985 = vadd.f32 0.0, %v984
      %986 = vmatmul.f32.gmra.mxu0 %v876
      %v987 = vpop.f32.mrf.mxu0
      %v988 = vadd.f32 0.0, %v987
      %989 = vmatmul.f32.gmra.mxu0 %v878
      %v990 = vpop.f32.mrf.mxu0
      %v991 = vadd.f32 0.0, %v990
      %992 = vmatmul.f32.gmra.mxu0 %v880
      %v993 = vpop.f32.mrf.mxu0
      %v994 = vadd.f32 0.0, %v993
      %995 = vmatmul.f32.gmra.mxu0 %v882
      %v996 = vpop.f32.mrf.mxu0
      %v997 = vadd.f32 0.0, %v996
      %998 = vmatmul.f32.gmra.mxu0 %v884
      %v999 = vpop.f32.mrf.mxu0
      %v1000 = vadd.f32 0.0, %v999
      %1001 = vdwg.mxu0
      %v1002 = vadd.f32 %v659, %v907
      %v1003 = vadd.f32 %v662, %v910
      %v1004 = vadd.f32 %v665, %v913
      %v1005 = vadd.f32 %v668, %v916
      %v1006 = vadd.f32 %v671, %v919
      %v1007 = vadd.f32 %v674, %v922
      %v1008 = vadd.f32 %v677, %v925
      %v1009 = vadd.f32 %v680, %v928
      %v1010 = vadd.f32 %v683, %v931
      %v1011 = vadd.f32 %v686, %v934
      %v1012 = vadd.f32 %v689, %v937
      %v1013 = vadd.f32 %v692, %v940
      %v1014 = vadd.f32 %v695, %v943
      %v1015 = vadd.f32 %v698, %v946
      %v1016 = vadd.f32 %v701, %v949
      %v1017 = vadd.f32 %v704, %v952
      %v1018 = vadd.f32 %v707, %v955
      %v1019 = vadd.f32 %v710, %v958
      %v1020 = vadd.f32 %v713, %v961
      %v1021 = vadd.f32 %v716, %v964
      %v1022 = vadd.f32 %v719, %v967
      %v1023 = vadd.f32 %v722, %v970
      %v1024 = vadd.f32 %v725, %v973
      %v1025 = vadd.f32 %v728, %v976
      %v1026 = vadd.f32 %v731, %v979
      %v1027 = vadd.f32 %v734, %v982
      %v1028 = vadd.f32 %v737, %v985
      %v1029 = vadd.f32 %v740, %v988
      %v1030 = vadd.f32 %v743, %v991
      %v1031 = vadd.f32 %v746, %v994
      %v1032 = vadd.f32 %v749, %v997
      %v1033 = vadd.f32 %v752, %v1000
      %s1034 = scalar_lea.vmem %s2, 12
      %v1035 = vld [vmem:[%s1034] sm:$0xf]
      %v1036 = vsel %vm392, %v285, 0
      %v1039 = vsel %vm392, %v286, 0
      %v1042 = vsel %vm457, %v1035, 0
      %1044 = vmatpush.msra.mxu0 0.0
      %1045 = vmatpush.msra.mxu0 0.0
      %1046 = vmatpush.msra.mxu0 0.0
      %1047 = vmatpush.msra.mxu0 0.0
      %1048 = vmatpush.msra.mxu0 0.0
      %1049 = vmatpush.msra.mxu0 0.0
      %1050 = vmatpush.msra.mxu0 0.0
      %1051 = vmatpush.msra.mxu0 0.0
      %1052 = vmatpush.msra.mxu0 0.0
      %1053 = vmatpush.msra.mxu0 0.0
      %1054 = vmatpush.msra.mxu0 0.0
      %1055 = vmatpush.msra.mxu0 0.0
      %1056 = vmatpush.msra.mxu0 0.0
      %1057 = vmatpush.msra.mxu0 0.0
      %1058 = vmatpush.msra.mxu0 0.0
      %1059 = vmatpush.msra.mxu0 %v1042
      %1060 = vmatmul.f32.gmra.mxu0 %v578
      %v1061 = vpop.f32.mrf.mxu0
      %v1062 = vadd.f32 0.0, %v1061
      %1063 = vmatmul.f32.gmra.mxu0 %v580
      %v1064 = vpop.f32.mrf.mxu0
      %v1065 = vadd.f32 0.0, %v1064
      %1066 = vmatmul.f32.gmra.mxu0 %v582
      %v1067 = vpop.f32.mrf.mxu0
      %v1068 = vadd.f32 0.0, %v1067
      %1069 = vmatmul.f32.gmra.mxu0 %v584
      %v1070 = vpop.f32.mrf.mxu0
      %v1071 = vadd.f32 0.0, %v1070
      %1072 = vmatmul.f32.gmra.mxu0 %v586
      %v1073 = vpop.f32.mrf.mxu0
      %v1074 = vadd.f32 0.0, %v1073
      %1075 = vmatmul.f32.gmra.mxu0 %v588
      %v1076 = vpop.f32.mrf.mxu0
      %v1077 = vadd.f32 0.0, %v1076
      %1078 = vmatmul.f32.gmra.mxu0 %v590
      %v1079 = vpop.f32.mrf.mxu0
      %v1080 = vadd.f32 0.0, %v1079
      %1081 = vmatmul.f32.gmra.mxu0 %v592
      %v1082 = vpop.f32.mrf.mxu0
      %v1083 = vadd.f32 0.0, %v1082
      %1084 = vmatmul.f32.gmra.mxu0 %v594
      %v1085 = vpop.f32.mrf.mxu0
      %v1086 = vadd.f32 0.0, %v1085
      %1087 = vmatmul.f32.gmra.mxu0 %v596
      %v1088 = vpop.f32.mrf.mxu0
      %v1089 = vadd.f32 0.0, %v1088
      %1090 = vmatmul.f32.gmra.mxu0 %v598
      %v1091 = vpop.f32.mrf.mxu0
      %v1092 = vadd.f32 0.0, %v1091
      %1093 = vmatmul.f32.gmra.mxu0 %v600
      %v1094 = vpop.f32.mrf.mxu0
      %v1095 = vadd.f32 0.0, %v1094
      %1096 = vmatmul.f32.gmra.mxu0 %v602
      %v1097 = vpop.f32.mrf.mxu0
      %v1098 = vadd.f32 0.0, %v1097
      %1099 = vmatmul.f32.gmra.mxu0 %v604
      %v1100 = vpop.f32.mrf.mxu0
      %v1101 = vadd.f32 0.0, %v1100
      %1102 = vmatmul.f32.gmra.mxu0 %v606
      %v1103 = vpop.f32.mrf.mxu0
      %v1104 = vadd.f32 0.0, %v1103
      %1105 = vmatmul.f32.gmra.mxu0 %v608
      %v1106 = vpop.f32.mrf.mxu0
      %v1107 = vadd.f32 0.0, %v1106
      %1108 = vmatmul.f32.gmra.mxu0 %v610
      %v1109 = vpop.f32.mrf.mxu0
      %v1110 = vadd.f32 0.0, %v1109
      %1111 = vmatmul.f32.gmra.mxu0 %v612
      %v1112 = vpop.f32.mrf.mxu0
      %v1113 = vadd.f32 0.0, %v1112
      %1114 = vmatmul.f32.gmra.mxu0 %v614
      %v1115 = vpop.f32.mrf.mxu0
      %v1116 = vadd.f32 0.0, %v1115
      %1117 = vmatmul.f32.gmra.mxu0 %v616
      %v1118 = vpop.f32.mrf.mxu0
      %v1119 = vadd.f32 0.0, %v1118
      %1120 = vmatmul.f32.gmra.mxu0 %v618
      %v1121 = vpop.f32.mrf.mxu0
      %v1122 = vadd.f32 0.0, %v1121
      %1123 = vmatmul.f32.gmra.mxu0 %v620
      %v1124 = vpop.f32.mrf.mxu0
      %v1125 = vadd.f32 0.0, %v1124
      %1126 = vmatmul.f32.gmra.mxu0 %v622
      %v1127 = vpop.f32.mrf.mxu0
      %v1128 = vadd.f32 0.0, %v1127
      %1129 = vmatmul.f32.gmra.mxu0 %v624
      %v1130 = vpop.f32.mrf.mxu0
      %v1131 = vadd.f32 0.0, %v1130
      %1132 = vmatmul.f32.gmra.mxu0 %v626
      %v1133 = vpop.f32.mrf.mxu0
      %v1134 = vadd.f32 0.0, %v1133
      %1135 = vmatmul.f32.gmra.mxu0 %v628
      %v1136 = vpop.f32.mrf.mxu0
      %v1137 = vadd.f32 0.0, %v1136
      %1138 = vmatmul.f32.gmra.mxu0 %v630
      %v1139 = vpop.f32.mrf.mxu0
      %v1140 = vadd.f32 0.0, %v1139
      %1141 = vmatmul.f32.gmra.mxu0 %v632
      %v1142 = vpop.f32.mrf.mxu0
      %v1143 = vadd.f32 0.0, %v1142
      %1144 = vmatmul.f32.gmra.mxu0 %v634
      %v1145 = vpop.f32.mrf.mxu0
      %v1146 = vadd.f32 0.0, %v1145
      %1147 = vmatmul.f32.gmra.mxu0 %v636
      %v1148 = vpop.f32.mrf.mxu0
      %v1149 = vadd.f32 0.0, %v1148
      %1150 = vmatmul.f32.gmra.mxu0 %v1036
      %v1151 = vpop.f32.mrf.mxu0
      %v1152 = vadd.f32 0.0, %v1151
      %1153 = vmatmul.f32.gmra.mxu0 %v1039
      %v1154 = vpop.f32.mrf.mxu0
      %v1155 = vadd.f32 0.0, %v1154
      %1156 = vdwg.mxu0
      %v1157 = vadd.f32 %v1002, %v1062
      %v1158 = vadd.f32 %v1003, %v1065
      %v1159 = vadd.f32 %v1004, %v1068
      %v1160 = vadd.f32 %v1005, %v1071
      %v1161 = vadd.f32 %v1006, %v1074
      %v1162 = vadd.f32 %v1007, %v1077
      %v1163 = vadd.f32 %v1008, %v1080
      %v1164 = vadd.f32 %v1009, %v1083
      %v1165 = vadd.f32 %v1010, %v1086
      %v1166 = vadd.f32 %v1011, %v1089
      %v1167 = vadd.f32 %v1012, %v1092
      %v1168 = vadd.f32 %v1013, %v1095
      %v1169 = vadd.f32 %v1014, %v1098
      %v1170 = vadd.f32 %v1015, %v1101
      %v1171 = vadd.f32 %v1016, %v1104
      %v1172 = vadd.f32 %v1017, %v1107
      %v1173 = vadd.f32 %v1018, %v1110
      %v1174 = vadd.f32 %v1019, %v1113
      %v1175 = vadd.f32 %v1020, %v1116
      %v1176 = vadd.f32 %v1021, %v1119
      %v1177 = vadd.f32 %v1022, %v1122
      %v1178 = vadd.f32 %v1023, %v1125
      %v1179 = vadd.f32 %v1024, %v1128
      %v1180 = vadd.f32 %v1025, %v1131
      %v1181 = vadd.f32 %v1026, %v1134
      %v1182 = vadd.f32 %v1027, %v1137
      %v1183 = vadd.f32 %v1028, %v1140
      %v1184 = vadd.f32 %v1029, %v1143
      %v1185 = vadd.f32 %v1030, %v1146
      %v1186 = vadd.f32 %v1031, %v1149
      %v1187 = vadd.f32 %v1032, %v1152
      %v1188 = vadd.f32 %v1033, %v1155
      %s1189 = scalar_lea.vmem %s2, 16
      %v1190 = vld [vmem:[%s1189] sm:$0xf]
      %v1192 = vrot.slane %v286, 1
      %v1193 = vsel %vm326, %v390, %v1192
      %v1194 = vrot.slane %v287, 1
      %v1195 = vsel %vm326, %v1192, %v1194
      %v1196 = vsel %vm392, %v1193, 0
      %v1198 = vsel %vm392, %v1195, 0
      %v1201 = vsel %vm457, %v1190, 0
      %1203 = vmatpush.msra.mxu0 0.0
      %1204 = vmatpush.msra.mxu0 0.0
      %1205 = vmatpush.msra.mxu0 0.0
      %1206 = vmatpush.msra.mxu0 0.0
      %1207 = vmatpush.msra.mxu0 0.0
      %1208 = vmatpush.msra.mxu0 0.0
      %1209 = vmatpush.msra.mxu0 0.0
      %1210 = vmatpush.msra.mxu0 0.0
      %1211 = vmatpush.msra.mxu0 0.0
      %1212 = vmatpush.msra.mxu0 0.0
      %1213 = vmatpush.msra.mxu0 0.0
      %1214 = vmatpush.msra.mxu0 0.0
      %1215 = vmatpush.msra.mxu0 0.0
      %1216 = vmatpush.msra.mxu0 0.0
      %1217 = vmatpush.msra.mxu0 0.0
      %1218 = vmatpush.msra.mxu0 %v1201
      %1219 = vmatmul.f32.gmra.mxu0 %v397
      %v1220 = vpop.f32.mrf.mxu0
      %v1221 = vadd.f32 0.0, %v1220
      %1222 = vmatmul.f32.gmra.mxu0 %v399
      %v1223 = vpop.f32.mrf.mxu0
      %v1224 = vadd.f32 0.0, %v1223
      %1225 = vmatmul.f32.gmra.mxu0 %v401
      %v1226 = vpop.f32.mrf.mxu0
      %v1227 = vadd.f32 0.0, %v1226
      %1228 = vmatmul.f32.gmra.mxu0 %v403
      %v1229 = vpop.f32.mrf.mxu0
      %v1230 = vadd.f32 0.0, %v1229
      %1231 = vmatmul.f32.gmra.mxu0 %v405
      %v1232 = vpop.f32.mrf.mxu0
      %v1233 = vadd.f32 0.0, %v1232
      %1234 = vmatmul.f32.gmra.mxu0 %v407
      %v1235 = vpop.f32.mrf.mxu0
      %v1236 = vadd.f32 0.0, %v1235
      %1237 = vmatmul.f32.gmra.mxu0 %v409
      %v1238 = vpop.f32.mrf.mxu0
      %v1239 = vadd.f32 0.0, %v1238
      %1240 = vmatmul.f32.gmra.mxu0 %v411
      %v1241 = vpop.f32.mrf.mxu0
      %v1242 = vadd.f32 0.0, %v1241
      %1243 = vmatmul.f32.gmra.mxu0 %v413
      %v1244 = vpop.f32.mrf.mxu0
      %v1245 = vadd.f32 0.0, %v1244
      %1246 = vmatmul.f32.gmra.mxu0 %v415
      %v1247 = vpop.f32.mrf.mxu0
      %v1248 = vadd.f32 0.0, %v1247
      %1249 = vmatmul.f32.gmra.mxu0 %v417
      %v1250 = vpop.f32.mrf.mxu0
      %v1251 = vadd.f32 0.0, %v1250
      %1252 = vmatmul.f32.gmra.mxu0 %v419
      %v1253 = vpop.f32.mrf.mxu0
      %v1254 = vadd.f32 0.0, %v1253
      %1255 = vmatmul.f32.gmra.mxu0 %v421
      %v1256 = vpop.f32.mrf.mxu0
      %v1257 = vadd.f32 0.0, %v1256
      %1258 = vmatmul.f32.gmra.mxu0 %v423
      %v1259 = vpop.f32.mrf.mxu0
      %v1260 = vadd.f32 0.0, %v1259
      %1261 = vmatmul.f32.gmra.mxu0 %v425
      %v1262 = vpop.f32.mrf.mxu0
      %v1263 = vadd.f32 0.0, %v1262
      %1264 = vmatmul.f32.gmra.mxu0 %v427
      %v1265 = vpop.f32.mrf.mxu0
      %v1266 = vadd.f32 0.0, %v1265
      %1267 = vmatmul.f32.gmra.mxu0 %v429
      %v1268 = vpop.f32.mrf.mxu0
      %v1269 = vadd.f32 0.0, %v1268
      %1270 = vmatmul.f32.gmra.mxu0 %v431
      %v1271 = vpop.f32.mrf.mxu0
      %v1272 = vadd.f32 0.0, %v1271
      %1273 = vmatmul.f32.gmra.mxu0 %v433
      %v1274 = vpop.f32.mrf.mxu0
      %v1275 = vadd.f32 0.0, %v1274
      %1276 = vmatmul.f32.gmra.mxu0 %v435
      %v1277 = vpop.f32.mrf.mxu0
      %v1278 = vadd.f32 0.0, %v1277
      %1279 = vmatmul.f32.gmra.mxu0 %v437
      %v1280 = vpop.f32.mrf.mxu0
      %v1281 = vadd.f32 0.0, %v1280
      %1282 = vmatmul.f32.gmra.mxu0 %v439
      %v1283 = vpop.f32.mrf.mxu0
      %v1284 = vadd.f32 0.0, %v1283
      %1285 = vmatmul.f32.gmra.mxu0 %v441
      %v1286 = vpop.f32.mrf.mxu0
      %v1287 = vadd.f32 0.0, %v1286
      %1288 = vmatmul.f32.gmra.mxu0 %v443
      %v1289 = vpop.f32.mrf.mxu0
      %v1290 = vadd.f32 0.0, %v1289
      %1291 = vmatmul.f32.gmra.mxu0 %v445
      %v1292 = vpop.f32.mrf.mxu0
      %v1293 = vadd.f32 0.0, %v1292
      %1294 = vmatmul.f32.gmra.mxu0 %v447
      %v1295 = vpop.f32.mrf.mxu0
      %v1296 = vadd.f32 0.0, %v1295
      %1297 = vmatmul.f32.gmra.mxu0 %v449
      %v1298 = vpop.f32.mrf.mxu0
      %v1299 = vadd.f32 0.0, %v1298
      %1300 = vmatmul.f32.gmra.mxu0 %v451
      %v1301 = vpop.f32.mrf.mxu0
      %v1302 = vadd.f32 0.0, %v1301
      %1303 = vmatmul.f32.gmra.mxu0 %v453
      %v1304 = vpop.f32.mrf.mxu0
      %v1305 = vadd.f32 0.0, %v1304
      %1306 = vmatmul.f32.gmra.mxu0 %v455
      %v1307 = vpop.f32.mrf.mxu0
      %v1308 = vadd.f32 0.0, %v1307
      %1309 = vmatmul.f32.gmra.mxu0 %v1196
      %v1310 = vpop.f32.mrf.mxu0
      %v1311 = vadd.f32 0.0, %v1310
      %1312 = vmatmul.f32.gmra.mxu0 %v1198
      %v1313 = vpop.f32.mrf.mxu0
      %v1314 = vadd.f32 0.0, %v1313
      %1315 = vdwg.mxu0
      %v1316 = vadd.f32 %v1157, %v1221
      %v1317 = vadd.f32 %v1158, %v1224
      %v1318 = vadd.f32 %v1159, %v1227
      %v1319 = vadd.f32 %v1160, %v1230
      %v1320 = vadd.f32 %v1161, %v1233
      %v1321 = vadd.f32 %v1162, %v1236
      %v1322 = vadd.f32 %v1163, %v1239
      %v1323 = vadd.f32 %v1164, %v1242
      %v1324 = vadd.f32 %v1165, %v1245
      %v1325 = vadd.f32 %v1166, %v1248
      %v1326 = vadd.f32 %v1167, %v1251
      %v1327 = vadd.f32 %v1168, %v1254
      %v1328 = vadd.f32 %v1169, %v1257
      %v1329 = vadd.f32 %v1170, %v1260
      %v1330 = vadd.f32 %v1171, %v1263
      %v1331 = vadd.f32 %v1172, %v1266
      %v1332 = vadd.f32 %v1173, %v1269
      %v1333 = vadd.f32 %v1174, %v1272
      %v1334 = vadd.f32 %v1175, %v1275
      %v1335 = vadd.f32 %v1176, %v1278
      %v1336 = vadd.f32 %v1177, %v1281
      %v1337 = vadd.f32 %v1178, %v1284
      %v1338 = vadd.f32 %v1179, %v1287
      %v1339 = vadd.f32 %v1180, %v1290
      %v1340 = vadd.f32 %v1181, %v1293
      %v1341 = vadd.f32 %v1182, %v1296
      %v1342 = vadd.f32 %v1183, %v1299
      %v1343 = vadd.f32 %v1184, %v1302
      %v1344 = vadd.f32 %v1185, %v1305
      %v1345 = vadd.f32 %v1186, %v1308
      %v1346 = vadd.f32 %v1187, %v1311
      %v1347 = vadd.f32 %v1188, %v1314
      %s1348 = scalar_lea.vmem %s2, 20
      %v1349 = vld [vmem:[%s1348] sm:$0xf]
      %v1350 = vrot.slane %v286, 2
      %v1351 = vsel %vm756, %v820, %v1350
      %v1352 = vrot.slane %v287, 2
      %v1353 = vsel %vm756, %v1350, %v1352
      %v1354 = vsel %vm392, %v1351, 0
      %v1356 = vsel %vm392, %v1353, 0
      %v1359 = vsel %vm457, %v1349, 0
      %1361 = vmatpush.msra.mxu0 0.0
      %1362 = vmatpush.msra.mxu0 0.0
      %1363 = vmatpush.msra.mxu0 0.0
      %1364 = vmatpush.msra.mxu0 0.0
      %1365 = vmatpush.msra.mxu0 0.0
      %1366 = vmatpush.msra.mxu0 0.0
      %1367 = vmatpush.msra.mxu0 0.0
      %1368 = vmatpush.msra.mxu0 0.0
      %1369 = vmatpush.msra.mxu0 0.0
      %1370 = vmatpush.msra.mxu0 0.0
      %1371 = vmatpush.msra.mxu0 0.0
      %1372 = vmatpush.msra.mxu0 0.0
      %1373 = vmatpush.msra.mxu0 0.0
      %1374 = vmatpush.msra.mxu0 0.0
      %1375 = vmatpush.msra.mxu0 0.0
      %1376 = vmatpush.msra.mxu0 %v1359
      %1377 = vmatmul.f32.gmra.mxu0 %v826
      %v1378 = vpop.f32.mrf.mxu0
      %v1379 = vadd.f32 0.0, %v1378
      %1380 = vmatmul.f32.gmra.mxu0 %v828
      %v1381 = vpop.f32.mrf.mxu0
      %v1382 = vadd.f32 0.0, %v1381
      %1383 = vmatmul.f32.gmra.mxu0 %v830
      %v1384 = vpop.f32.mrf.mxu0
      %v1385 = vadd.f32 0.0, %v1384
      %1386 = vmatmul.f32.gmra.mxu0 %v832
      %v1387 = vpop.f32.mrf.mxu0
      %v1388 = vadd.f32 0.0, %v1387
      %1389 = vmatmul.f32.gmra.mxu0 %v834
      %v1390 = vpop.f32.mrf.mxu0
      %v1391 = vadd.f32 0.0, %v1390
      %1392 = vmatmul.f32.gmra.mxu0 %v836
      %v1393 = vpop.f32.mrf.mxu0
      %v1394 = vadd.f32 0.0, %v1393
      %1395 = vmatmul.f32.gmra.mxu0 %v838
      %v1396 = vpop.f32.mrf.mxu0
      %v1397 = vadd.f32 0.0, %v1396
      %1398 = vmatmul.f32.gmra.mxu0 %v840
      %v1399 = vpop.f32.mrf.mxu0
      %v1400 = vadd.f32 0.0, %v1399
      %1401 = vmatmul.f32.gmra.mxu0 %v842
      %v1402 = vpop.f32.mrf.mxu0
      %v1403 = vadd.f32 0.0, %v1402
      %1404 = vmatmul.f32.gmra.mxu0 %v844
      %v1405 = vpop.f32.mrf.mxu0
      %v1406 = vadd.f32 0.0, %v1405
      %1407 = vmatmul.f32.gmra.mxu0 %v846
      %v1408 = vpop.f32.mrf.mxu0
      %v1409 = vadd.f32 0.0, %v1408
      %1410 = vmatmul.f32.gmra.mxu0 %v848
      %v1411 = vpop.f32.mrf.mxu0
      %v1412 = vadd.f32 0.0, %v1411
      %1413 = vmatmul.f32.gmra.mxu0 %v850
      %v1414 = vpop.f32.mrf.mxu0
      %v1415 = vadd.f32 0.0, %v1414
      %1416 = vmatmul.f32.gmra.mxu0 %v852
      %v1417 = vpop.f32.mrf.mxu0
      %v1418 = vadd.f32 0.0, %v1417
      %1419 = vmatmul.f32.gmra.mxu0 %v854
      %v1420 = vpop.f32.mrf.mxu0
      %v1421 = vadd.f32 0.0, %v1420
      %1422 = vmatmul.f32.gmra.mxu0 %v856
      %v1423 = vpop.f32.mrf.mxu0
      %v1424 = vadd.f32 0.0, %v1423
      %1425 = vmatmul.f32.gmra.mxu0 %v858
      %v1426 = vpop.f32.mrf.mxu0
      %v1427 = vadd.f32 0.0, %v1426
      %1428 = vmatmul.f32.gmra.mxu0 %v860
      %v1429 = vpop.f32.mrf.mxu0
      %v1430 = vadd.f32 0.0, %v1429
      %1431 = vmatmul.f32.gmra.mxu0 %v862
      %v1432 = vpop.f32.mrf.mxu0
      %v1433 = vadd.f32 0.0, %v1432
      %1434 = vmatmul.f32.gmra.mxu0 %v864
      %v1435 = vpop.f32.mrf.mxu0
      %v1436 = vadd.f32 0.0, %v1435
      %1437 = vmatmul.f32.gmra.mxu0 %v866
      %v1438 = vpop.f32.mrf.mxu0
      %v1439 = vadd.f32 0.0, %v1438
      %1440 = vmatmul.f32.gmra.mxu0 %v868
      %v1441 = vpop.f32.mrf.mxu0
      %v1442 = vadd.f32 0.0, %v1441
      %1443 = vmatmul.f32.gmra.mxu0 %v870
      %v1444 = vpop.f32.mrf.mxu0
      %v1445 = vadd.f32 0.0, %v1444
      %1446 = vmatmul.f32.gmra.mxu0 %v872
      %v1447 = vpop.f32.mrf.mxu0
      %v1448 = vadd.f32 0.0, %v1447
      %1449 = vmatmul.f32.gmra.mxu0 %v874
      %v1450 = vpop.f32.mrf.mxu0
      %v1451 = vadd.f32 0.0, %v1450
      %1452 = vmatmul.f32.gmra.mxu0 %v876
      %v1453 = vpop.f32.mrf.mxu0
      %v1454 = vadd.f32 0.0, %v1453
      %1455 = vmatmul.f32.gmra.mxu0 %v878
      %v1456 = vpop.f32.mrf.mxu0
      %v1457 = vadd.f32 0.0, %v1456
      %1458 = vmatmul.f32.gmra.mxu0 %v880
      %v1459 = vpop.f32.mrf.mxu0
      %v1460 = vadd.f32 0.0, %v1459
      %1461 = vmatmul.f32.gmra.mxu0 %v882
      %v1462 = vpop.f32.mrf.mxu0
      %v1463 = vadd.f32 0.0, %v1462
      %1464 = vmatmul.f32.gmra.mxu0 %v884
      %v1465 = vpop.f32.mrf.mxu0
      %v1466 = vadd.f32 0.0, %v1465
      %1467 = vmatmul.f32.gmra.mxu0 %v1354
      %v1468 = vpop.f32.mrf.mxu0
      %v1469 = vadd.f32 0.0, %v1468
      %1470 = vmatmul.f32.gmra.mxu0 %v1356
      %v1471 = vpop.f32.mrf.mxu0
      %v1472 = vadd.f32 0.0, %v1471
      %1473 = vdwg.mxu0
      %v1474 = vadd.f32 %v1316, %v1379
      %v1475 = vadd.f32 %v1317, %v1382
      %v1476 = vadd.f32 %v1318, %v1385
      %v1477 = vadd.f32 %v1319, %v1388
      %v1478 = vadd.f32 %v1320, %v1391
      %v1479 = vadd.f32 %v1321, %v1394
      %v1480 = vadd.f32 %v1322, %v1397
      %v1481 = vadd.f32 %v1323, %v1400
      %v1482 = vadd.f32 %v1324, %v1403
      %v1483 = vadd.f32 %v1325, %v1406
      %v1484 = vadd.f32 %v1326, %v1409
      %v1485 = vadd.f32 %v1327, %v1412
      %v1486 = vadd.f32 %v1328, %v1415
      %v1487 = vadd.f32 %v1329, %v1418
      %v1488 = vadd.f32 %v1330, %v1421
      %v1489 = vadd.f32 %v1331, %v1424
      %v1490 = vadd.f32 %v1332, %v1427
      %v1491 = vadd.f32 %v1333, %v1430
      %v1492 = vadd.f32 %v1334, %v1433
      %v1493 = vadd.f32 %v1335, %v1436
      %v1494 = vadd.f32 %v1336, %v1439
      %v1495 = vadd.f32 %v1337, %v1442
      %v1496 = vadd.f32 %v1338, %v1445
      %v1497 = vadd.f32 %v1339, %v1448
      %v1498 = vadd.f32 %v1340, %v1451
      %v1499 = vadd.f32 %v1341, %v1454
      %v1500 = vadd.f32 %v1342, %v1457
      %v1501 = vadd.f32 %v1343, %v1460
      %v1502 = vadd.f32 %v1344, %v1463
      %v1503 = vadd.f32 %v1345, %v1466
      %v1504 = vadd.f32 %v1346, %v1469
      %v1505 = vadd.f32 %v1347, %v1472
      %s1506 = scalar_lea.vmem %s2, 24
      %v1507 = vld [vmem:[%s1506] sm:$0xf]
      %v1508 = vsel %vm392, %v287, 0
      %v1511 = vsel %vm392, %v288, 0
      %v1514 = vsel %vm457, %v1507, 0
      %1516 = vmatpush.msra.mxu0 0.0
      %1517 = vmatpush.msra.mxu0 0.0
      %1518 = vmatpush.msra.mxu0 0.0
      %1519 = vmatpush.msra.mxu0 0.0
      %1520 = vmatpush.msra.mxu0 0.0
      %1521 = vmatpush.msra.mxu0 0.0
      %1522 = vmatpush.msra.mxu0 0.0
      %1523 = vmatpush.msra.mxu0 0.0
      %1524 = vmatpush.msra.mxu0 0.0
      %1525 = vmatpush.msra.mxu0 0.0
      %1526 = vmatpush.msra.mxu0 0.0
      %1527 = vmatpush.msra.mxu0 0.0
      %1528 = vmatpush.msra.mxu0 0.0
      %1529 = vmatpush.msra.mxu0 0.0
      %1530 = vmatpush.msra.mxu0 0.0
      %1531 = vmatpush.msra.mxu0 %v1514
      %1532 = vmatmul.f32.gmra.mxu0 %v582
      %v1533 = vpop.f32.mrf.mxu0
      %v1534 = vadd.f32 0.0, %v1533
      %1535 = vmatmul.f32.gmra.mxu0 %v584
      %v1536 = vpop.f32.mrf.mxu0
      %v1537 = vadd.f32 0.0, %v1536
      %1538 = vmatmul.f32.gmra.mxu0 %v586
      %v1539 = vpop.f32.mrf.mxu0
      %v1540 = vadd.f32 0.0, %v1539
      %1541 = vmatmul.f32.gmra.mxu0 %v588
      %v1542 = vpop.f32.mrf.mxu0
      %v1543 = vadd.f32 0.0, %v1542
      %1544 = vmatmul.f32.gmra.mxu0 %v590
      %v1545 = vpop.f32.mrf.mxu0
      %v1546 = vadd.f32 0.0, %v1545
      %1547 = vmatmul.f32.gmra.mxu0 %v592
      %v1548 = vpop.f32.mrf.mxu0
      %v1549 = vadd.f32 0.0, %v1548
      %1550 = vmatmul.f32.gmra.mxu0 %v594
      %v1551 = vpop.f32.mrf.mxu0
      %v1552 = vadd.f32 0.0, %v1551
      %1553 = vmatmul.f32.gmra.mxu0 %v596
      %v1554 = vpop.f32.mrf.mxu0
      %v1555 = vadd.f32 0.0, %v1554
      %1556 = vmatmul.f32.gmra.mxu0 %v598
      %v1557 = vpop.f32.mrf.mxu0
      %v1558 = vadd.f32 0.0, %v1557
      %1559 = vmatmul.f32.gmra.mxu0 %v600
      %v1560 = vpop.f32.mrf.mxu0
      %v1561 = vadd.f32 0.0, %v1560
      %1562 = vmatmul.f32.gmra.mxu0 %v602
      %v1563 = vpop.f32.mrf.mxu0
      %v1564 = vadd.f32 0.0, %v1563
      %1565 = vmatmul.f32.gmra.mxu0 %v604
      %v1566 = vpop.f32.mrf.mxu0
      %v1567 = vadd.f32 0.0, %v1566
      %1568 = vmatmul.f32.gmra.mxu0 %v606
      %v1569 = vpop.f32.mrf.mxu0
      %v1570 = vadd.f32 0.0, %v1569
      %1571 = vmatmul.f32.gmra.mxu0 %v608
      %v1572 = vpop.f32.mrf.mxu0
      %v1573 = vadd.f32 0.0, %v1572
      %1574 = vmatmul.f32.gmra.mxu0 %v610
      %v1575 = vpop.f32.mrf.mxu0
      %v1576 = vadd.f32 0.0, %v1575
      %1577 = vmatmul.f32.gmra.mxu0 %v612
      %v1578 = vpop.f32.mrf.mxu0
      %v1579 = vadd.f32 0.0, %v1578
      %1580 = vmatmul.f32.gmra.mxu0 %v614
      %v1581 = vpop.f32.mrf.mxu0
      %v1582 = vadd.f32 0.0, %v1581
      %1583 = vmatmul.f32.gmra.mxu0 %v616
      %v1584 = vpop.f32.mrf.mxu0
      %v1585 = vadd.f32 0.0, %v1584
      %1586 = vmatmul.f32.gmra.mxu0 %v618
      %v1587 = vpop.f32.mrf.mxu0
      %v1588 = vadd.f32 0.0, %v1587
      %1589 = vmatmul.f32.gmra.mxu0 %v620
      %v1590 = vpop.f32.mrf.mxu0
      %v1591 = vadd.f32 0.0, %v1590
      %1592 = vmatmul.f32.gmra.mxu0 %v622
      %v1593 = vpop.f32.mrf.mxu0
      %v1594 = vadd.f32 0.0, %v1593
      %1595 = vmatmul.f32.gmra.mxu0 %v624
      %v1596 = vpop.f32.mrf.mxu0
      %v1597 = vadd.f32 0.0, %v1596
      %1598 = vmatmul.f32.gmra.mxu0 %v626
      %v1599 = vpop.f32.mrf.mxu0
      %v1600 = vadd.f32 0.0, %v1599
      %1601 = vmatmul.f32.gmra.mxu0 %v628
      %v1602 = vpop.f32.mrf.mxu0
      %v1603 = vadd.f32 0.0, %v1602
      %1604 = vmatmul.f32.gmra.mxu0 %v630
      %v1605 = vpop.f32.mrf.mxu0
      %v1606 = vadd.f32 0.0, %v1605
      %1607 = vmatmul.f32.gmra.mxu0 %v632
      %v1608 = vpop.f32.mrf.mxu0
      %v1609 = vadd.f32 0.0, %v1608
      %1610 = vmatmul.f32.gmra.mxu0 %v634
      %v1611 = vpop.f32.mrf.mxu0
      %v1612 = vadd.f32 0.0, %v1611
      %1613 = vmatmul.f32.gmra.mxu0 %v636
      %v1614 = vpop.f32.mrf.mxu0
      %v1615 = vadd.f32 0.0, %v1614
      %1616 = vmatmul.f32.gmra.mxu0 %v1036
      %v1617 = vpop.f32.mrf.mxu0
      %v1618 = vadd.f32 0.0, %v1617
      %1619 = vmatmul.f32.gmra.mxu0 %v1039
      %v1620 = vpop.f32.mrf.mxu0
      %v1621 = vadd.f32 0.0, %v1620
      %1622 = vmatmul.f32.gmra.mxu0 %v1508
      %v1623 = vpop.f32.mrf.mxu0
      %v1624 = vadd.f32 0.0, %v1623
      %1625 = vmatmul.f32.gmra.mxu0 %v1511
      %v1626 = vpop.f32.mrf.mxu0
      %v1627 = vadd.f32 0.0, %v1626
      %1628 = vdwg.mxu0
      %v1629 = vadd.f32 %v1474, %v1534
      %v1630 = vadd.f32 %v1475, %v1537
      %v1631 = vadd.f32 %v1476, %v1540
      %v1632 = vadd.f32 %v1477, %v1543
      %v1633 = vadd.f32 %v1478, %v1546
      %v1634 = vadd.f32 %v1479, %v1549
      %v1635 = vadd.f32 %v1480, %v1552
      %v1636 = vadd.f32 %v1481, %v1555
      %v1637 = vadd.f32 %v1482, %v1558
      %v1638 = vadd.f32 %v1483, %v1561
      %v1639 = vadd.f32 %v1484, %v1564
      %v1640 = vadd.f32 %v1485, %v1567
      %v1641 = vadd.f32 %v1486, %v1570
      %v1642 = vadd.f32 %v1487, %v1573
      %v1643 = vadd.f32 %v1488, %v1576
      %v1644 = vadd.f32 %v1489, %v1579
      %v1645 = vadd.f32 %v1490, %v1582
      %v1646 = vadd.f32 %v1491, %v1585
      %v1647 = vadd.f32 %v1492, %v1588
      %v1648 = vadd.f32 %v1493, %v1591
      %v1649 = vadd.f32 %v1494, %v1594
      %v1650 = vadd.f32 %v1495, %v1597
      %v1651 = vadd.f32 %v1496, %v1600
      %v1652 = vadd.f32 %v1497, %v1603
      %v1653 = vadd.f32 %v1498, %v1606
      %v1654 = vadd.f32 %v1499, %v1609
      %v1655 = vadd.f32 %v1500, %v1612
      %v1656 = vadd.f32 %v1501, %v1615
      %v1657 = vadd.f32 %v1502, %v1618
      %v1658 = vadd.f32 %v1503, %v1621
      %v1659 = vadd.f32 %v1504, %v1624
      %v1660 = vadd.f32 %v1505, %v1627
      %s1661 = scalar_lea.vmem %s2, 28
      %v1662 = vld [vmem:[%s1661] sm:$0xf]
      %v1664 = vrot.slane %v288, 1
      %v1665 = vsel %vm326, %v1194, %v1664
      %v1666 = vrot.slane %v289, 1
      %v1667 = vsel %vm326, %v1664, %v1666
      %v1668 = vsel %vm392, %v1665, 0
      %v1670 = vsel %vm392, %v1667, 0
      %v1673 = vsel %vm457, %v1662, 0
      %1675 = vmatpush.msra.mxu0 0.0
      %1676 = vmatpush.msra.mxu0 0.0
      %1677 = vmatpush.msra.mxu0 0.0
      %1678 = vmatpush.msra.mxu0 0.0
      %1679 = vmatpush.msra.mxu0 0.0
      %1680 = vmatpush.msra.mxu0 0.0
      %1681 = vmatpush.msra.mxu0 0.0
      %1682 = vmatpush.msra.mxu0 0.0
      %1683 = vmatpush.msra.mxu0 0.0
      %1684 = vmatpush.msra.mxu0 0.0
      %1685 = vmatpush.msra.mxu0 0.0
      %1686 = vmatpush.msra.mxu0 0.0
      %1687 = vmatpush.msra.mxu0 0.0
      %1688 = vmatpush.msra.mxu0 0.0
      %1689 = vmatpush.msra.mxu0 0.0
      %1690 = vmatpush.msra.mxu0 %v1673
      %1691 = vmatmul.f32.gmra.mxu0 %v401
      %v1692 = vpop.f32.mrf.mxu0
      %v1693 = vadd.f32 0.0, %v1692
      %1694 = vmatmul.f32.gmra.mxu0 %v403
      %v1695 = vpop.f32.mrf.mxu0
      %v1696 = vadd.f32 0.0, %v1695
      %1697 = vmatmul.f32.gmra.mxu0 %v405
      %v1698 = vpop.f32.mrf.mxu0
      %v1699 = vadd.f32 0.0, %v1698
      %1700 = vmatmul.f32.gmra.mxu0 %v407
      %v1701 = vpop.f32.mrf.mxu0
      %v1702 = vadd.f32 0.0, %v1701
      %1703 = vmatmul.f32.gmra.mxu0 %v409
      %v1704 = vpop.f32.mrf.mxu0
      %v1705 = vadd.f32 0.0, %v1704
      %1706 = vmatmul.f32.gmra.mxu0 %v411
      %v1707 = vpop.f32.mrf.mxu0
      %v1708 = vadd.f32 0.0, %v1707
      %1709 = vmatmul.f32.gmra.mxu0 %v413
      %v1710 = vpop.f32.mrf.mxu0
      %v1711 = vadd.f32 0.0, %v1710
      %1712 = vmatmul.f32.gmra.mxu0 %v415
      %v1713 = vpop.f32.mrf.mxu0
      %v1714 = vadd.f32 0.0, %v1713
      %1715 = vmatmul.f32.gmra.mxu0 %v417
      %v1716 = vpop.f32.mrf.mxu0
      %v1717 = vadd.f32 0.0, %v1716
      %1718 = vmatmul.f32.gmra.mxu0 %v419
      %v1719 = vpop.f32.mrf.mxu0
      %v1720 = vadd.f32 0.0, %v1719
      %1721 = vmatmul.f32.gmra.mxu0 %v421
      %v1722 = vpop.f32.mrf.mxu0
      %v1723 = vadd.f32 0.0, %v1722
      %1724 = vmatmul.f32.gmra.mxu0 %v423
      %v1725 = vpop.f32.mrf.mxu0
      %v1726 = vadd.f32 0.0, %v1725
      %1727 = vmatmul.f32.gmra.mxu0 %v425
      %v1728 = vpop.f32.mrf.mxu0
      %v1729 = vadd.f32 0.0, %v1728
      %1730 = vmatmul.f32.gmra.mxu0 %v427
      %v1731 = vpop.f32.mrf.mxu0
      %v1732 = vadd.f32 0.0, %v1731
      %1733 = vmatmul.f32.gmra.mxu0 %v429
      %v1734 = vpop.f32.mrf.mxu0
      %v1735 = vadd.f32 0.0, %v1734
      %1736 = vmatmul.f32.gmra.mxu0 %v431
      %v1737 = vpop.f32.mrf.mxu0
      %v1738 = vadd.f32 0.0, %v1737
      %1739 = vmatmul.f32.gmra.mxu0 %v433
      %v1740 = vpop.f32.mrf.mxu0
      %v1741 = vadd.f32 0.0, %v1740
      %1742 = vmatmul.f32.gmra.mxu0 %v435
      %v1743 = vpop.f32.mrf.mxu0
      %v1744 = vadd.f32 0.0, %v1743
      %1745 = vmatmul.f32.gmra.mxu0 %v437
      %v1746 = vpop.f32.mrf.mxu0
      %v1747 = vadd.f32 0.0, %v1746
      %1748 = vmatmul.f32.gmra.mxu0 %v439
      %v1749 = vpop.f32.mrf.mxu0
      %v1750 = vadd.f32 0.0, %v1749
      %1751 = vmatmul.f32.gmra.mxu0 %v441
      %v1752 = vpop.f32.mrf.mxu0
      %v1753 = vadd.f32 0.0, %v1752
      %1754 = vmatmul.f32.gmra.mxu0 %v443
      %v1755 = vpop.f32.mrf.mxu0
      %v1756 = vadd.f32 0.0, %v1755
      %1757 = vmatmul.f32.gmra.mxu0 %v445
      %v1758 = vpop.f32.mrf.mxu0
      %v1759 = vadd.f32 0.0, %v1758
      %1760 = vmatmul.f32.gmra.mxu0 %v447
      %v1761 = vpop.f32.mrf.mxu0
      %v1762 = vadd.f32 0.0, %v1761
      %1763 = vmatmul.f32.gmra.mxu0 %v449
      %v1764 = vpop.f32.mrf.mxu0
      %v1765 = vadd.f32 0.0, %v1764
      %1766 = vmatmul.f32.gmra.mxu0 %v451
      %v1767 = vpop.f32.mrf.mxu0
      %v1768 = vadd.f32 0.0, %v1767
      %1769 = vmatmul.f32.gmra.mxu0 %v453
      %v1770 = vpop.f32.mrf.mxu0
      %v1771 = vadd.f32 0.0, %v1770
      %1772 = vmatmul.f32.gmra.mxu0 %v455
      %v1773 = vpop.f32.mrf.mxu0
      %v1774 = vadd.f32 0.0, %v1773
      %1775 = vmatmul.f32.gmra.mxu0 %v1196
      %v1776 = vpop.f32.mrf.mxu0
      %v1777 = vadd.f32 0.0, %v1776
      %1778 = vmatmul.f32.gmra.mxu0 %v1198
      %v1779 = vpop.f32.mrf.mxu0
      %v1780 = vadd.f32 0.0, %v1779
      %1781 = vmatmul.f32.gmra.mxu0 %v1668
      %v1782 = vpop.f32.mrf.mxu0
      %v1783 = vadd.f32 0.0, %v1782
      %1784 = vmatmul.f32.gmra.mxu0 %v1670
      %v1785 = vpop.f32.mrf.mxu0
      %v1786 = vadd.f32 0.0, %v1785
      %1787 = vdwg.mxu0
      %v1788 = vadd.f32 %v1629, %v1693
      %v1789 = vadd.f32 %v1630, %v1696
      %v1790 = vadd.f32 %v1631, %v1699
      %v1791 = vadd.f32 %v1632, %v1702
      %v1792 = vadd.f32 %v1633, %v1705
      %v1793 = vadd.f32 %v1634, %v1708
      %v1794 = vadd.f32 %v1635, %v1711
      %v1795 = vadd.f32 %v1636, %v1714
      %v1796 = vadd.f32 %v1637, %v1717
      %v1797 = vadd.f32 %v1638, %v1720
      %v1798 = vadd.f32 %v1639, %v1723
      %v1799 = vadd.f32 %v1640, %v1726
      %v1800 = vadd.f32 %v1641, %v1729
      %v1801 = vadd.f32 %v1642, %v1732
      %v1802 = vadd.f32 %v1643, %v1735
      %v1803 = vadd.f32 %v1644, %v1738
      %v1804 = vadd.f32 %v1645, %v1741
      %v1805 = vadd.f32 %v1646, %v1744
      %v1806 = vadd.f32 %v1647, %v1747
      %v1807 = vadd.f32 %v1648, %v1750
      %v1808 = vadd.f32 %v1649, %v1753
      %v1809 = vadd.f32 %v1650, %v1756
      %v1810 = vadd.f32 %v1651, %v1759
      %v1811 = vadd.f32 %v1652, %v1762
      %v1812 = vadd.f32 %v1653, %v1765
      %v1813 = vadd.f32 %v1654, %v1768
      %v1814 = vadd.f32 %v1655, %v1771
      %v1815 = vadd.f32 %v1656, %v1774
      %v1816 = vadd.f32 %v1657, %v1777
      %v1817 = vadd.f32 %v1658, %v1780
      %v1818 = vadd.f32 %v1659, %v1783
      %v1819 = vadd.f32 %v1660, %v1786
      %s1820 = scalar_lea.vmem %s2, 32
      %v1821 = vld [vmem:[%s1820] sm:$0xf]
      %v1822 = vrot.slane %v288, 2
      %v1823 = vsel %vm756, %v1352, %v1822
      %v1824 = vrot.slane %v289, 2
      %v1825 = vsel %vm756, %v1822, %v1824
      %v1826 = vsel %vm392, %v1823, 0
      %v1828 = vsel %vm392, %v1825, 0
      %v1831 = vsel %vm457, %v1821, 0
      %1833 = vmatpush.msra.mxu0 0.0
      %1834 = vmatpush.msra.mxu0 0.0
      %1835 = vmatpush.msra.mxu0 0.0
      %1836 = vmatpush.msra.mxu0 0.0
      %1837 = vmatpush.msra.mxu0 0.0
      %1838 = vmatpush.msra.mxu0 0.0
      %1839 = vmatpush.msra.mxu0 0.0
      %1840 = vmatpush.msra.mxu0 0.0
      %1841 = vmatpush.msra.mxu0 0.0
      %1842 = vmatpush.msra.mxu0 0.0
      %1843 = vmatpush.msra.mxu0 0.0
      %1844 = vmatpush.msra.mxu0 0.0
      %1845 = vmatpush.msra.mxu0 0.0
      %1846 = vmatpush.msra.mxu0 0.0
      %1847 = vmatpush.msra.mxu0 0.0
      %1848 = vmatpush.msra.mxu0 %v1831
      %1849 = vmatmul.f32.gmra.mxu0 %v830
      %v1850 = vpop.f32.mrf.mxu0
      %v1851 = vadd.f32 0.0, %v1850
      %1852 = vmatmul.f32.gmra.mxu0 %v832
      %v1853 = vpop.f32.mrf.mxu0
      %v1854 = vadd.f32 0.0, %v1853
      %1855 = vmatmul.f32.gmra.mxu0 %v834
      %v1856 = vpop.f32.mrf.mxu0
      %v1857 = vadd.f32 0.0, %v1856
      %1858 = vmatmul.f32.gmra.mxu0 %v836
      %v1859 = vpop.f32.mrf.mxu0
      %v1860 = vadd.f32 0.0, %v1859
      %1861 = vmatmul.f32.gmra.mxu0 %v838
      %v1862 = vpop.f32.mrf.mxu0
      %v1863 = vadd.f32 0.0, %v1862
      %1864 = vmatmul.f32.gmra.mxu0 %v840
      %v1865 = vpop.f32.mrf.mxu0
      %v1866 = vadd.f32 0.0, %v1865
      %1867 = vmatmul.f32.gmra.mxu0 %v842
      %v1868 = vpop.f32.mrf.mxu0
      %v1869 = vadd.f32 0.0, %v1868
      %1870 = vmatmul.f32.gmra.mxu0 %v844
      %v1871 = vpop.f32.mrf.mxu0
      %v1872 = vadd.f32 0.0, %v1871
      %1873 = vmatmul.f32.gmra.mxu0 %v846
      %v1874 = vpop.f32.mrf.mxu0
      %v1875 = vadd.f32 0.0, %v1874
      %1876 = vmatmul.f32.gmra.mxu0 %v848
      %v1877 = vpop.f32.mrf.mxu0
      %v1878 = vadd.f32 0.0, %v1877
      %1879 = vmatmul.f32.gmra.mxu0 %v850
      %v1880 = vpop.f32.mrf.mxu0
      %v1881 = vadd.f32 0.0, %v1880
      %1882 = vmatmul.f32.gmra.mxu0 %v852
      %v1883 = vpop.f32.mrf.mxu0
      %v1884 = vadd.f32 0.0, %v1883
      %1885 = vmatmul.f32.gmra.mxu0 %v854
      %v1886 = vpop.f32.mrf.mxu0
      %v1887 = vadd.f32 0.0, %v1886
      %1888 = vmatmul.f32.gmra.mxu0 %v856
      %v1889 = vpop.f32.mrf.mxu0
      %v1890 = vadd.f32 0.0, %v1889
      %1891 = vmatmul.f32.gmra.mxu0 %v858
      %v1892 = vpop.f32.mrf.mxu0
      %v1893 = vadd.f32 0.0, %v1892
      %1894 = vmatmul.f32.gmra.mxu0 %v860
      %v1895 = vpop.f32.mrf.mxu0
      %v1896 = vadd.f32 0.0, %v1895
      %1897 = vmatmul.f32.gmra.mxu0 %v862
      %v1898 = vpop.f32.mrf.mxu0
      %v1899 = vadd.f32 0.0, %v1898
      %1900 = vmatmul.f32.gmra.mxu0 %v864
      %v1901 = vpop.f32.mrf.mxu0
      %v1902 = vadd.f32 0.0, %v1901
      %1903 = vmatmul.f32.gmra.mxu0 %v866
      %v1904 = vpop.f32.mrf.mxu0
      %v1905 = vadd.f32 0.0, %v1904
      %1906 = vmatmul.f32.gmra.mxu0 %v868
      %v1907 = vpop.f32.mrf.mxu0
      %v1908 = vadd.f32 0.0, %v1907
      %1909 = vmatmul.f32.gmra.mxu0 %v870
      %v1910 = vpop.f32.mrf.mxu0
      %v1911 = vadd.f32 0.0, %v1910
      %1912 = vmatmul.f32.gmra.mxu0 %v872
      %v1913 = vpop.f32.mrf.mxu0
      %v1914 = vadd.f32 0.0, %v1913
      %1915 = vmatmul.f32.gmra.mxu0 %v874
      %v1916 = vpop.f32.mrf.mxu0
      %v1917 = vadd.f32 0.0, %v1916
      %1918 = vmatmul.f32.gmra.mxu0 %v876
      %v1919 = vpop.f32.mrf.mxu0
      %v1920 = vadd.f32 0.0, %v1919
      %1921 = vmatmul.f32.gmra.mxu0 %v878
      %v1922 = vpop.f32.mrf.mxu0
      %v1923 = vadd.f32 0.0, %v1922
      %1924 = vmatmul.f32.gmra.mxu0 %v880
      %v1925 = vpop.f32.mrf.mxu0
      %v1926 = vadd.f32 0.0, %v1925
      %1927 = vmatmul.f32.gmra.mxu0 %v882
      %v1928 = vpop.f32.mrf.mxu0
      %v1929 = vadd.f32 0.0, %v1928
      %1930 = vmatmul.f32.gmra.mxu0 %v884
      %v1931 = vpop.f32.mrf.mxu0
      %v1932 = vadd.f32 0.0, %v1931
      %1933 = vmatmul.f32.gmra.mxu0 %v1354
      %v1934 = vpop.f32.mrf.mxu0
      %v1935 = vadd.f32 0.0, %v1934
      %1936 = vmatmul.f32.gmra.mxu0 %v1356
      %v1937 = vpop.f32.mrf.mxu0
      %v1938 = vadd.f32 0.0, %v1937
      %1939 = vmatmul.f32.gmra.mxu0 %v1826
      %v1940 = vpop.f32.mrf.mxu0
      %v1941 = vadd.f32 0.0, %v1940
      %1942 = vmatmul.f32.gmra.mxu0 %v1828
      %v1943 = vpop.f32.mrf.mxu0
      %v1944 = vadd.f32 0.0, %v1943
      %1945 = vdwg.mxu0
      %v1946 = vadd.f32 %v1788, %v1851
      %v1947 = vadd.f32 %v1789, %v1854
      %v1948 = vadd.f32 %v1790, %v1857
      %v1949 = vadd.f32 %v1791, %v1860
      %v1950 = vadd.f32 %v1792, %v1863
      %v1951 = vadd.f32 %v1793, %v1866
      %v1952 = vadd.f32 %v1794, %v1869
      %v1953 = vadd.f32 %v1795, %v1872
      %v1954 = vadd.f32 %v1796, %v1875
      %v1955 = vadd.f32 %v1797, %v1878
      %v1956 = vadd.f32 %v1798, %v1881
      %v1957 = vadd.f32 %v1799, %v1884
      %v1958 = vadd.f32 %v1800, %v1887
      %v1959 = vadd.f32 %v1801, %v1890
      %v1960 = vadd.f32 %v1802, %v1893
      %v1961 = vadd.f32 %v1803, %v1896
      %v1962 = vadd.f32 %v1804, %v1899
      %v1963 = vadd.f32 %v1805, %v1902
      %v1964 = vadd.f32 %v1806, %v1905
      %v1965 = vadd.f32 %v1807, %v1908
      %v1966 = vadd.f32 %v1808, %v1911
      %v1967 = vadd.f32 %v1809, %v1914
      %v1968 = vadd.f32 %v1810, %v1917
      %v1969 = vadd.f32 %v1811, %v1920
      %v1970 = vadd.f32 %v1812, %v1923
      %v1971 = vadd.f32 %v1813, %v1926
      %v1972 = vadd.f32 %v1814, %v1929
      %v1973 = vadd.f32 %v1815, %v1932
      %v1974 = vadd.f32 %v1816, %v1935
      %v1975 = vadd.f32 %v1817, %v1938
      %v1976 = vadd.f32 %v1818, %v1941
      %v1977 = vadd.f32 %v1819, %v1944
      %v1978 = vld [vmem:[%s3] sm:$0x1]
      %v1980 = vperm.slane %v1978, 0
      %v1982 = vadd.f32 %v1946, %v1980
      %v1983 = vadd.f32 %v1947, %v1980
      %v1984 = vadd.f32 %v1948, %v1980
      %v1985 = vadd.f32 %v1949, %v1980
      %v1986 = vadd.f32 %v1950, %v1980
      %v1987 = vadd.f32 %v1951, %v1980
      %v1988 = vadd.f32 %v1952, %v1980
      %v1989 = vadd.f32 %v1953, %v1980
      %v1990 = vadd.f32 %v1954, %v1980
      %v1991 = vadd.f32 %v1955, %v1980
      %v1992 = vadd.f32 %v1956, %v1980
      %v1993 = vadd.f32 %v1957, %v1980
      %v1994 = vadd.f32 %v1958, %v1980
      %v1995 = vadd.f32 %v1959, %v1980
      %v1996 = vadd.f32 %v1960, %v1980
      %v1997 = vadd.f32 %v1961, %v1980
      %v1998 = vadd.f32 %v1962, %v1980
      %v1999 = vadd.f32 %v1963, %v1980
      %v2000 = vadd.f32 %v1964, %v1980
      %v2001 = vadd.f32 %v1965, %v1980
      %v2002 = vadd.f32 %v1966, %v1980
      %v2003 = vadd.f32 %v1967, %v1980
      %v2004 = vadd.f32 %v1968, %v1980
      %v2005 = vadd.f32 %v1969, %v1980
      %v2006 = vadd.f32 %v1970, %v1980
      %v2007 = vadd.f32 %v1971, %v1980
      %v2008 = vadd.f32 %v1972, %v1980
      %v2009 = vadd.f32 %v1973, %v1980
      %v2010 = vadd.f32 %v1974, %v1980
      %v2011 = vadd.f32 %v1975, %v1980
      %v2012 = vadd.f32 %v1976, %v1980
      %v2013 = vadd.f32 %v1977, %v1980
      %v2014 = vlaneseq
      %v2015 = vand.u32 %v2014, 127
      %vm2016 = vcmp.lt.s32.totalorder %v2015, 8
      %2017 = vadd.xlane.f32.xlu0 %v1982
      %v2018 = vpop.xlane.xlu0 %2017
      %2019 = vadd.xlane.f32.xlu0 %v1983
      %v2020 = vpop.xlane.xlu0 %2019
      %2021 = vadd.xlane.f32.xlu0 %v1984
      %v2022 = vpop.xlane.xlu0 %2021
      %2023 = vadd.xlane.f32.xlu0 %v1985
      %v2024 = vpop.xlane.xlu0 %2023
      %2025 = vadd.xlane.f32.xlu0 %v1986
      %v2026 = vpop.xlane.xlu0 %2025
      %2027 = vadd.xlane.f32.xlu0 %v1987
      %v2028 = vpop.xlane.xlu0 %2027
      %2029 = vadd.xlane.f32.xlu0 %v1988
      %v2030 = vpop.xlane.xlu0 %2029
      %2031 = vadd.xlane.f32.xlu0 %v1989
      %v2032 = vpop.xlane.xlu0 %2031
      %2033 = vadd.xlane.f32.xlu0 %v1990
      %v2034 = vpop.xlane.xlu0 %2033
      %2035 = vadd.xlane.f32.xlu0 %v1991
      %v2036 = vpop.xlane.xlu0 %2035
      %2037 = vadd.xlane.f32.xlu0 %v1992
      %v2038 = vpop.xlane.xlu0 %2037
      %2039 = vadd.xlane.f32.xlu0 %v1993
      %v2040 = vpop.xlane.xlu0 %2039
      %2041 = vadd.xlane.f32.xlu0 %v1994
      %v2042 = vpop.xlane.xlu0 %2041
      %2043 = vadd.xlane.f32.xlu0 %v1995
      %v2044 = vpop.xlane.xlu0 %2043
      %2045 = vadd.xlane.f32.xlu0 %v1996
      %v2046 = vpop.xlane.xlu0 %2045
      %2047 = vadd.xlane.f32.xlu0 %v1997
      %v2048 = vpop.xlane.xlu0 %2047
      %2049 = vadd.xlane.f32.xlu0 %v1998
      %v2050 = vpop.xlane.xlu0 %2049
      %2051 = vadd.xlane.f32.xlu0 %v1999
      %v2052 = vpop.xlane.xlu0 %2051
      %2053 = vadd.xlane.f32.xlu0 %v2000
      %v2054 = vpop.xlane.xlu0 %2053
      %2055 = vadd.xlane.f32.xlu0 %v2001
      %v2056 = vpop.xlane.xlu0 %2055
      %2057 = vadd.xlane.f32.xlu0 %v2002
      %v2058 = vpop.xlane.xlu0 %2057
      %2059 = vadd.xlane.f32.xlu0 %v2003
      %v2060 = vpop.xlane.xlu0 %2059
      %2061 = vadd.xlane.f32.xlu0 %v2004
      %v2062 = vpop.xlane.xlu0 %2061
      %2063 = vadd.xlane.f32.xlu0 %v2005
      %v2064 = vpop.xlane.xlu0 %2063
      %2065 = vadd.xlane.f32.xlu0 %v2006
      %v2066 = vpop.xlane.xlu0 %2065
      %2067 = vadd.xlane.f32.xlu0 %v2007
      %v2068 = vpop.xlane.xlu0 %2067
      %2069 = vadd.xlane.f32.xlu0 %v2008
      %v2070 = vpop.xlane.xlu0 %2069
      %2071 = vadd.xlane.f32.xlu0 %v2009
      %v2072 = vpop.xlane.xlu0 %2071
      %2073 = vadd.xlane.f32.xlu0 %v2010
      %v2074 = vpop.xlane.xlu0 %2073
      %2075 = vadd.xlane.f32.xlu0 %v2011
      %v2076 = vpop.xlane.xlu0 %2075
      %2077 = vadd.xlane.f32.xlu0 %v2012
      %v2078 = vpop.xlane.xlu0 %2077
      %2079 = vadd.xlane.f32.xlu0 %v2013
      %v2080 = vpop.xlane.xlu0 %2079
      %v2081 = vmul.f32 %v2018, 0.125
      %v2082 = vmul.f32 %v2020, 0.125
      %v2083 = vmul.f32 %v2022, 0.125
      %v2084 = vmul.f32 %v2024, 0.125
      %v2085 = vmul.f32 %v2026, 0.125
      %v2086 = vmul.f32 %v2028, 0.125
      %v2087 = vmul.f32 %v2030, 0.125
      %v2088 = vmul.f32 %v2032, 0.125
      %v2089 = vmul.f32 %v2034, 0.125
      %v2090 = vmul.f32 %v2036, 0.125
      %v2091 = vmul.f32 %v2038, 0.125
      %v2092 = vmul.f32 %v2040, 0.125
      %v2093 = vmul.f32 %v2042, 0.125
      %v2094 = vmul.f32 %v2044, 0.125
      %v2095 = vmul.f32 %v2046, 0.125
      %v2096 = vmul.f32 %v2048, 0.125
      %v2097 = vmul.f32 %v2050, 0.125
      %v2098 = vmul.f32 %v2052, 0.125
      %v2099 = vmul.f32 %v2054, 0.125
      %v2100 = vmul.f32 %v2056, 0.125
      %v2101 = vmul.f32 %v2058, 0.125
      %v2102 = vmul.f32 %v2060, 0.125
      %v2103 = vmul.f32 %v2062, 0.125
      %v2104 = vmul.f32 %v2064, 0.125
      %v2105 = vmul.f32 %v2066, 0.125
      %v2106 = vmul.f32 %v2068, 0.125
      %v2107 = vmul.f32 %v2070, 0.125
      %v2108 = vmul.f32 %v2072, 0.125
      %v2109 = vmul.f32 %v2074, 0.125
      %v2110 = vmul.f32 %v2076, 0.125
      %v2111 = vmul.f32 %v2078, 0.125
      %v2112 = vmul.f32 %v2080, 0.125
      %v2113 = vsub.f32 %v1982, %v2081
      %v2114 = vsub.f32 %v1983, %v2082
      %v2115 = vsub.f32 %v1984, %v2083
      %v2116 = vsub.f32 %v1985, %v2084
      %v2117 = vsub.f32 %v1986, %v2085
      %v2118 = vsub.f32 %v1987, %v2086
      %v2119 = vsub.f32 %v1988, %v2087
      %v2120 = vsub.f32 %v1989, %v2088
      %v2121 = vsub.f32 %v1990, %v2089
      %v2122 = vsub.f32 %v1991, %v2090
      %v2123 = vsub.f32 %v1992, %v2091
      %v2124 = vsub.f32 %v1993, %v2092
      %v2125 = vsub.f32 %v1994, %v2093
      %v2126 = vsub.f32 %v1995, %v2094
      %v2127 = vsub.f32 %v1996, %v2095
      %v2128 = vsub.f32 %v1997, %v2096
      %v2129 = vsub.f32 %v1998, %v2097
      %v2130 = vsub.f32 %v1999, %v2098
      %v2131 = vsub.f32 %v2000, %v2099
      %v2132 = vsub.f32 %v2001, %v2100
      %v2133 = vsub.f32 %v2002, %v2101
      %v2134 = vsub.f32 %v2003, %v2102
      %v2135 = vsub.f32 %v2004, %v2103
      %v2136 = vsub.f32 %v2005, %v2104
      %v2137 = vsub.f32 %v2006, %v2105
      %v2138 = vsub.f32 %v2007, %v2106
      %v2139 = vsub.f32 %v2008, %v2107
      %v2140 = vsub.f32 %v2009, %v2108
      %v2141 = vsub.f32 %v2010, %v2109
      %v2142 = vsub.f32 %v2011, %v2110
      %v2143 = vsub.f32 %v2012, %v2111
      %v2144 = vsub.f32 %v2013, %v2112
      %v2145 = vsel %vm2016, %v2113, 0.0
      %v2146 = vsel %vm2016, %v2114, 0.0
      %v2147 = vsel %vm2016, %v2115, 0.0
      %v2148 = vsel %vm2016, %v2116, 0.0
      %v2149 = vsel %vm2016, %v2117, 0.0
      %v2150 = vsel %vm2016, %v2118, 0.0
      %v2151 = vsel %vm2016, %v2119, 0.0
      %v2152 = vsel %vm2016, %v2120, 0.0
      %v2153 = vsel %vm2016, %v2121, 0.0
      %v2154 = vsel %vm2016, %v2122, 0.0
      %v2155 = vsel %vm2016, %v2123, 0.0
      %v2156 = vsel %vm2016, %v2124, 0.0
      %v2157 = vsel %vm2016, %v2125, 0.0
      %v2158 = vsel %vm2016, %v2126, 0.0
      %v2159 = vsel %vm2016, %v2127, 0.0
      %v2160 = vsel %vm2016, %v2128, 0.0
      %v2161 = vsel %vm2016, %v2129, 0.0
      %v2162 = vsel %vm2016, %v2130, 0.0
      %v2163 = vsel %vm2016, %v2131, 0.0
      %v2164 = vsel %vm2016, %v2132, 0.0
      %v2165 = vsel %vm2016, %v2133, 0.0
      %v2166 = vsel %vm2016, %v2134, 0.0
      %v2167 = vsel %vm2016, %v2135, 0.0
      %v2168 = vsel %vm2016, %v2136, 0.0
      %v2169 = vsel %vm2016, %v2137, 0.0
      %v2170 = vsel %vm2016, %v2138, 0.0
      %v2171 = vsel %vm2016, %v2139, 0.0
      %v2172 = vsel %vm2016, %v2140, 0.0
      %v2173 = vsel %vm2016, %v2141, 0.0
      %v2174 = vsel %vm2016, %v2142, 0.0
      %v2175 = vsel %vm2016, %v2143, 0.0
      %v2176 = vsel %vm2016, %v2144, 0.0
      %v2177 = vmul.f32 %v2145, %v2145
      %v2178 = vmul.f32 %v2146, %v2146
      %v2179 = vmul.f32 %v2147, %v2147
      %v2180 = vmul.f32 %v2148, %v2148
      %v2181 = vmul.f32 %v2149, %v2149
      %v2182 = vmul.f32 %v2150, %v2150
      %v2183 = vmul.f32 %v2151, %v2151
      %v2184 = vmul.f32 %v2152, %v2152
      %v2185 = vmul.f32 %v2153, %v2153
      %v2186 = vmul.f32 %v2154, %v2154
      %v2187 = vmul.f32 %v2155, %v2155
      %v2188 = vmul.f32 %v2156, %v2156
      %v2189 = vmul.f32 %v2157, %v2157
      %v2190 = vmul.f32 %v2158, %v2158
      %v2191 = vmul.f32 %v2159, %v2159
      %v2192 = vmul.f32 %v2160, %v2160
      %v2193 = vmul.f32 %v2161, %v2161
      %v2194 = vmul.f32 %v2162, %v2162
      %v2195 = vmul.f32 %v2163, %v2163
      %v2196 = vmul.f32 %v2164, %v2164
      %v2197 = vmul.f32 %v2165, %v2165
      %v2198 = vmul.f32 %v2166, %v2166
      %v2199 = vmul.f32 %v2167, %v2167
      %v2200 = vmul.f32 %v2168, %v2168
      %v2201 = vmul.f32 %v2169, %v2169
      %v2202 = vmul.f32 %v2170, %v2170
      %v2203 = vmul.f32 %v2171, %v2171
      %v2204 = vmul.f32 %v2172, %v2172
      %v2205 = vmul.f32 %v2173, %v2173
      %v2206 = vmul.f32 %v2174, %v2174
      %v2207 = vmul.f32 %v2175, %v2175
      %v2208 = vmul.f32 %v2176, %v2176
      %2209 = vadd.xlane.f32.xlu0 %v2177
      %v2210 = vpop.xlane.xlu0 %2209
      %2211 = vadd.xlane.f32.xlu0 %v2178
      %v2212 = vpop.xlane.xlu0 %2211
      %2213 = vadd.xlane.f32.xlu0 %v2179
      %v2214 = vpop.xlane.xlu0 %2213
      %2215 = vadd.xlane.f32.xlu0 %v2180
      %v2216 = vpop.xlane.xlu0 %2215
      %2217 = vadd.xlane.f32.xlu0 %v2181
      %v2218 = vpop.xlane.xlu0 %2217
      %2219 = vadd.xlane.f32.xlu0 %v2182
      %v2220 = vpop.xlane.xlu0 %2219
      %2221 = vadd.xlane.f32.xlu0 %v2183
      %v2222 = vpop.xlane.xlu0 %2221
      %2223 = vadd.xlane.f32.xlu0 %v2184
      %v2224 = vpop.xlane.xlu0 %2223
      %2225 = vadd.xlane.f32.xlu0 %v2185
      %v2226 = vpop.xlane.xlu0 %2225
      %2227 = vadd.xlane.f32.xlu0 %v2186
      %v2228 = vpop.xlane.xlu0 %2227
      %2229 = vadd.xlane.f32.xlu0 %v2187
      %v2230 = vpop.xlane.xlu0 %2229
      %2231 = vadd.xlane.f32.xlu0 %v2188
      %v2232 = vpop.xlane.xlu0 %2231
      %2233 = vadd.xlane.f32.xlu0 %v2189
      %v2234 = vpop.xlane.xlu0 %2233
      %2235 = vadd.xlane.f32.xlu0 %v2190
      %v2236 = vpop.xlane.xlu0 %2235
      %2237 = vadd.xlane.f32.xlu0 %v2191
      %v2238 = vpop.xlane.xlu0 %2237
      %2239 = vadd.xlane.f32.xlu0 %v2192
      %v2240 = vpop.xlane.xlu0 %2239
      %2241 = vadd.xlane.f32.xlu0 %v2193
      %v2242 = vpop.xlane.xlu0 %2241
      %2243 = vadd.xlane.f32.xlu0 %v2194
      %v2244 = vpop.xlane.xlu0 %2243
      %2245 = vadd.xlane.f32.xlu0 %v2195
      %v2246 = vpop.xlane.xlu0 %2245
      %2247 = vadd.xlane.f32.xlu0 %v2196
      %v2248 = vpop.xlane.xlu0 %2247
      %2249 = vadd.xlane.f32.xlu0 %v2197
      %v2250 = vpop.xlane.xlu0 %2249
      %2251 = vadd.xlane.f32.xlu0 %v2198
      %v2252 = vpop.xlane.xlu0 %2251
      %2253 = vadd.xlane.f32.xlu0 %v2199
      %v2254 = vpop.xlane.xlu0 %2253
      %2255 = vadd.xlane.f32.xlu0 %v2200
      %v2256 = vpop.xlane.xlu0 %2255
      %2257 = vadd.xlane.f32.xlu0 %v2201
      %v2258 = vpop.xlane.xlu0 %2257
      %2259 = vadd.xlane.f32.xlu0 %v2202
      %v2260 = vpop.xlane.xlu0 %2259
      %2261 = vadd.xlane.f32.xlu0 %v2203
      %v2262 = vpop.xlane.xlu0 %2261
      %2263 = vadd.xlane.f32.xlu0 %v2204
      %v2264 = vpop.xlane.xlu0 %2263
      %2265 = vadd.xlane.f32.xlu0 %v2205
      %v2266 = vpop.xlane.xlu0 %2265
      %2267 = vadd.xlane.f32.xlu0 %v2206
      %v2268 = vpop.xlane.xlu0 %2267
      %2269 = vadd.xlane.f32.xlu0 %v2207
      %v2270 = vpop.xlane.xlu0 %2269
      %2271 = vadd.xlane.f32.xlu0 %v2208
      %v2272 = vpop.xlane.xlu0 %2271
      %v2273 = vmul.f32 %v2210, 0.125
      %v2274 = vmul.f32 %v2212, 0.125
      %v2275 = vmul.f32 %v2214, 0.125
      %v2276 = vmul.f32 %v2216, 0.125
      %v2277 = vmul.f32 %v2218, 0.125
      %v2278 = vmul.f32 %v2220, 0.125
      %v2279 = vmul.f32 %v2222, 0.125
      %v2280 = vmul.f32 %v2224, 0.125
      %v2281 = vmul.f32 %v2226, 0.125
      %v2282 = vmul.f32 %v2228, 0.125
      %v2283 = vmul.f32 %v2230, 0.125
      %v2284 = vmul.f32 %v2232, 0.125
      %v2285 = vmul.f32 %v2234, 0.125
      %v2286 = vmul.f32 %v2236, 0.125
      %v2287 = vmul.f32 %v2238, 0.125
      %v2288 = vmul.f32 %v2240, 0.125
      %v2289 = vmul.f32 %v2242, 0.125
      %v2290 = vmul.f32 %v2244, 0.125
      %v2291 = vmul.f32 %v2246, 0.125
      %v2292 = vmul.f32 %v2248, 0.125
      %v2293 = vmul.f32 %v2250, 0.125
      %v2294 = vmul.f32 %v2252, 0.125
      %v2295 = vmul.f32 %v2254, 0.125
      %v2296 = vmul.f32 %v2256, 0.125
      %v2297 = vmul.f32 %v2258, 0.125
      %v2298 = vmul.f32 %v2260, 0.125
      %v2299 = vmul.f32 %v2262, 0.125
      %v2300 = vmul.f32 %v2264, 0.125
      %v2301 = vmul.f32 %v2266, 0.125
      %v2302 = vmul.f32 %v2268, 0.125
      %v2303 = vmul.f32 %v2270, 0.125
      %v2304 = vmul.f32 %v2272, 0.125
      %v2305 = vadd.f32 %v2273, 1e-05
      %v2306 = vadd.f32 %v2274, 1e-05
      %v2307 = vadd.f32 %v2275, 1e-05
      %v2308 = vadd.f32 %v2276, 1e-05
      %v2309 = vadd.f32 %v2277, 1e-05
      %v2310 = vadd.f32 %v2278, 1e-05
      %v2311 = vadd.f32 %v2279, 1e-05
      %v2312 = vadd.f32 %v2280, 1e-05
      %v2313 = vadd.f32 %v2281, 1e-05
      %v2314 = vadd.f32 %v2282, 1e-05
      %v2315 = vadd.f32 %v2283, 1e-05
      %v2316 = vadd.f32 %v2284, 1e-05
      %v2317 = vadd.f32 %v2285, 1e-05
      %v2318 = vadd.f32 %v2286, 1e-05
      %v2319 = vadd.f32 %v2287, 1e-05
      %v2320 = vadd.f32 %v2288, 1e-05
      %v2321 = vadd.f32 %v2289, 1e-05
      %v2322 = vadd.f32 %v2290, 1e-05
      %v2323 = vadd.f32 %v2291, 1e-05
      %v2324 = vadd.f32 %v2292, 1e-05
      %v2325 = vadd.f32 %v2293, 1e-05
      %v2326 = vadd.f32 %v2294, 1e-05
      %v2327 = vadd.f32 %v2295, 1e-05
      %v2328 = vadd.f32 %v2296, 1e-05
      %v2329 = vadd.f32 %v2297, 1e-05
      %v2330 = vadd.f32 %v2298, 1e-05
      %v2331 = vadd.f32 %v2299, 1e-05
      %v2332 = vadd.f32 %v2300, 1e-05
      %v2333 = vadd.f32 %v2301, 1e-05
      %v2334 = vadd.f32 %v2302, 1e-05
      %v2335 = vadd.f32 %v2303, 1e-05
      %v2336 = vadd.f32 %v2304, 1e-05
      %v2337 = vrsqrt.pop %v2305
      %v2338 = vmul.f32 %v2337, %v2305
      %v2339 = vmul.f32 %v2338, %v2337
      %v2340 = vmul.f32 0.5, %v2339
      %v2341 = vsub.f32 1.5, %v2340
      %v2342 = vmul.f32 %v2337, %v2341
      %vm2343 = vweird.f32 %v2305
      %vm2344 = vweird.f32 %v2337
      %vm2345 = vmor %vm2343, %vm2344
      %v2346 = vsel %vm2345, %v2337, %v2342
      %v2347 = vrsqrt.pop %v2306
      %v2348 = vmul.f32 %v2347, %v2306
      %v2349 = vmul.f32 %v2348, %v2347
      %v2350 = vmul.f32 0.5, %v2349
      %v2351 = vsub.f32 1.5, %v2350
      %v2352 = vmul.f32 %v2347, %v2351
      %vm2353 = vweird.f32 %v2306
      %vm2354 = vweird.f32 %v2347
      %vm2355 = vmor %vm2353, %vm2354
      %v2356 = vsel %vm2355, %v2347, %v2352
      %v2357 = vrsqrt.pop %v2307
      %v2358 = vmul.f32 %v2357, %v2307
      %v2359 = vmul.f32 %v2358, %v2357
      %v2360 = vmul.f32 0.5, %v2359
      %v2361 = vsub.f32 1.5, %v2360
      %v2362 = vmul.f32 %v2357, %v2361
      %vm2363 = vweird.f32 %v2307
      %vm2364 = vweird.f32 %v2357
      %vm2365 = vmor %vm2363, %vm2364
      %v2366 = vsel %vm2365, %v2357, %v2362
      %v2367 = vrsqrt.pop %v2308
      %v2368 = vmul.f32 %v2367, %v2308
      %v2369 = vmul.f32 %v2368, %v2367
      %v2370 = vmul.f32 0.5, %v2369
      %v2371 = vsub.f32 1.5, %v2370
      %v2372 = vmul.f32 %v2367, %v2371
      %vm2373 = vweird.f32 %v2308
      %vm2374 = vweird.f32 %v2367
      %vm2375 = vmor %vm2373, %vm2374
      %v2376 = vsel %vm2375, %v2367, %v2372
      %v2377 = vrsqrt.pop %v2309
      %v2378 = vmul.f32 %v2377, %v2309
      %v2379 = vmul.f32 %v2378, %v2377
      %v2380 = vmul.f32 0.5, %v2379
      %v2381 = vsub.f32 1.5, %v2380
      %v2382 = vmul.f32 %v2377, %v2381
      %vm2383 = vweird.f32 %v2309
      %vm2384 = vweird.f32 %v2377
      %vm2385 = vmor %vm2383, %vm2384
      %v2386 = vsel %vm2385, %v2377, %v2382
      %v2387 = vrsqrt.pop %v2310
      %v2388 = vmul.f32 %v2387, %v2310
      %v2389 = vmul.f32 %v2388, %v2387
      %v2390 = vmul.f32 0.5, %v2389
      %v2391 = vsub.f32 1.5, %v2390
      %v2392 = vmul.f32 %v2387, %v2391
      %vm2393 = vweird.f32 %v2310
      %vm2394 = vweird.f32 %v2387
      %vm2395 = vmor %vm2393, %vm2394
      %v2396 = vsel %vm2395, %v2387, %v2392
      %v2397 = vrsqrt.pop %v2311
      %v2398 = vmul.f32 %v2397, %v2311
      %v2399 = vmul.f32 %v2398, %v2397
      %v2400 = vmul.f32 0.5, %v2399
      %v2401 = vsub.f32 1.5, %v2400
      %v2402 = vmul.f32 %v2397, %v2401
      %vm2403 = vweird.f32 %v2311
      %vm2404 = vweird.f32 %v2397
      %vm2405 = vmor %vm2403, %vm2404
      %v2406 = vsel %vm2405, %v2397, %v2402
      %v2407 = vrsqrt.pop %v2312
      %v2408 = vmul.f32 %v2407, %v2312
      %v2409 = vmul.f32 %v2408, %v2407
      %v2410 = vmul.f32 0.5, %v2409
      %v2411 = vsub.f32 1.5, %v2410
      %v2412 = vmul.f32 %v2407, %v2411
      %vm2413 = vweird.f32 %v2312
      %vm2414 = vweird.f32 %v2407
      %vm2415 = vmor %vm2413, %vm2414
      %v2416 = vsel %vm2415, %v2407, %v2412
      %v2417 = vrsqrt.pop %v2313
      %v2418 = vmul.f32 %v2417, %v2313
      %v2419 = vmul.f32 %v2418, %v2417
      %v2420 = vmul.f32 0.5, %v2419
      %v2421 = vsub.f32 1.5, %v2420
      %v2422 = vmul.f32 %v2417, %v2421
      %vm2423 = vweird.f32 %v2313
      %vm2424 = vweird.f32 %v2417
      %vm2425 = vmor %vm2423, %vm2424
      %v2426 = vsel %vm2425, %v2417, %v2422
      %v2427 = vrsqrt.pop %v2314
      %v2428 = vmul.f32 %v2427, %v2314
      %v2429 = vmul.f32 %v2428, %v2427
      %v2430 = vmul.f32 0.5, %v2429
      %v2431 = vsub.f32 1.5, %v2430
      %v2432 = vmul.f32 %v2427, %v2431
      %vm2433 = vweird.f32 %v2314
      %vm2434 = vweird.f32 %v2427
      %vm2435 = vmor %vm2433, %vm2434
      %v2436 = vsel %vm2435, %v2427, %v2432
      %v2437 = vrsqrt.pop %v2315
      %v2438 = vmul.f32 %v2437, %v2315
      %v2439 = vmul.f32 %v2438, %v2437
      %v2440 = vmul.f32 0.5, %v2439
      %v2441 = vsub.f32 1.5, %v2440
      %v2442 = vmul.f32 %v2437, %v2441
      %vm2443 = vweird.f32 %v2315
      %vm2444 = vweird.f32 %v2437
      %vm2445 = vmor %vm2443, %vm2444
      %v2446 = vsel %vm2445, %v2437, %v2442
      %v2447 = vrsqrt.pop %v2316
      %v2448 = vmul.f32 %v2447, %v2316
      %v2449 = vmul.f32 %v2448, %v2447
      %v2450 = vmul.f32 0.5, %v2449
      %v2451 = vsub.f32 1.5, %v2450
      %v2452 = vmul.f32 %v2447, %v2451
      %vm2453 = vweird.f32 %v2316
      %vm2454 = vweird.f32 %v2447
      %vm2455 = vmor %vm2453, %vm2454
      %v2456 = vsel %vm2455, %v2447, %v2452
      %v2457 = vrsqrt.pop %v2317
      %v2458 = vmul.f32 %v2457, %v2317
      %v2459 = vmul.f32 %v2458, %v2457
      %v2460 = vmul.f32 0.5, %v2459
      %v2461 = vsub.f32 1.5, %v2460
      %v2462 = vmul.f32 %v2457, %v2461
      %vm2463 = vweird.f32 %v2317
      %vm2464 = vweird.f32 %v2457
      %vm2465 = vmor %vm2463, %vm2464
      %v2466 = vsel %vm2465, %v2457, %v2462
      %v2467 = vrsqrt.pop %v2318
      %v2468 = vmul.f32 %v2467, %v2318
      %v2469 = vmul.f32 %v2468, %v2467
      %v2470 = vmul.f32 0.5, %v2469
      %v2471 = vsub.f32 1.5, %v2470
      %v2472 = vmul.f32 %v2467, %v2471
      %vm2473 = vweird.f32 %v2318
      %vm2474 = vweird.f32 %v2467
      %vm2475 = vmor %vm2473, %vm2474
      %v2476 = vsel %vm2475, %v2467, %v2472
      %v2477 = vrsqrt.pop %v2319
      %v2478 = vmul.f32 %v2477, %v2319
      %v2479 = vmul.f32 %v2478, %v2477
      %v2480 = vmul.f32 0.5, %v2479
      %v2481 = vsub.f32 1.5, %v2480
      %v2482 = vmul.f32 %v2477, %v2481
      %vm2483 = vweird.f32 %v2319
      %vm2484 = vweird.f32 %v2477
      %vm2485 = vmor %vm2483, %vm2484
      %v2486 = vsel %vm2485, %v2477, %v2482
      %v2487 = vrsqrt.pop %v2320
      %v2488 = vmul.f32 %v2487, %v2320
      %v2489 = vmul.f32 %v2488, %v2487
      %v2490 = vmul.f32 0.5, %v2489
      %v2491 = vsub.f32 1.5, %v2490
      %v2492 = vmul.f32 %v2487, %v2491
      %vm2493 = vweird.f32 %v2320
      %vm2494 = vweird.f32 %v2487
      %vm2495 = vmor %vm2493, %vm2494
      %v2496 = vsel %vm2495, %v2487, %v2492
      %v2497 = vrsqrt.pop %v2321
      %v2498 = vmul.f32 %v2497, %v2321
      %v2499 = vmul.f32 %v2498, %v2497
      %v2500 = vmul.f32 0.5, %v2499
      %v2501 = vsub.f32 1.5, %v2500
      %v2502 = vmul.f32 %v2497, %v2501
      %vm2503 = vweird.f32 %v2321
      %vm2504 = vweird.f32 %v2497
      %vm2505 = vmor %vm2503, %vm2504
      %v2506 = vsel %vm2505, %v2497, %v2502
      %v2507 = vrsqrt.pop %v2322
      %v2508 = vmul.f32 %v2507, %v2322
      %v2509 = vmul.f32 %v2508, %v2507
      %v2510 = vmul.f32 0.5, %v2509
      %v2511 = vsub.f32 1.5, %v2510
      %v2512 = vmul.f32 %v2507, %v2511
      %vm2513 = vweird.f32 %v2322
      %vm2514 = vweird.f32 %v2507
      %vm2515 = vmor %vm2513, %vm2514
      %v2516 = vsel %vm2515, %v2507, %v2512
      %v2517 = vrsqrt.pop %v2323
      %v2518 = vmul.f32 %v2517, %v2323
      %v2519 = vmul.f32 %v2518, %v2517
      %v2520 = vmul.f32 0.5, %v2519
      %v2521 = vsub.f32 1.5, %v2520
      %v2522 = vmul.f32 %v2517, %v2521
      %vm2523 = vweird.f32 %v2323
      %vm2524 = vweird.f32 %v2517
      %vm2525 = vmor %vm2523, %vm2524
      %v2526 = vsel %vm2525, %v2517, %v2522
      %v2527 = vrsqrt.pop %v2324
      %v2528 = vmul.f32 %v2527, %v2324
      %v2529 = vmul.f32 %v2528, %v2527
      %v2530 = vmul.f32 0.5, %v2529
      %v2531 = vsub.f32 1.5, %v2530
      %v2532 = vmul.f32 %v2527, %v2531
      %vm2533 = vweird.f32 %v2324
      %vm2534 = vweird.f32 %v2527
      %vm2535 = vmor %vm2533, %vm2534
      %v2536 = vsel %vm2535, %v2527, %v2532
      %v2537 = vrsqrt.pop %v2325
      %v2538 = vmul.f32 %v2537, %v2325
      %v2539 = vmul.f32 %v2538, %v2537
      %v2540 = vmul.f32 0.5, %v2539
      %v2541 = vsub.f32 1.5, %v2540
      %v2542 = vmul.f32 %v2537, %v2541
      %vm2543 = vweird.f32 %v2325
      %vm2544 = vweird.f32 %v2537
      %vm2545 = vmor %vm2543, %vm2544
      %v2546 = vsel %vm2545, %v2537, %v2542
      %v2547 = vrsqrt.pop %v2326
      %v2548 = vmul.f32 %v2547, %v2326
      %v2549 = vmul.f32 %v2548, %v2547
      %v2550 = vmul.f32 0.5, %v2549
      %v2551 = vsub.f32 1.5, %v2550
      %v2552 = vmul.f32 %v2547, %v2551
      %vm2553 = vweird.f32 %v2326
      %vm2554 = vweird.f32 %v2547
      %vm2555 = vmor %vm2553, %vm2554
      %v2556 = vsel %vm2555, %v2547, %v2552
      %v2557 = vrsqrt.pop %v2327
      %v2558 = vmul.f32 %v2557, %v2327
      %v2559 = vmul.f32 %v2558, %v2557
      %v2560 = vmul.f32 0.5, %v2559
      %v2561 = vsub.f32 1.5, %v2560
      %v2562 = vmul.f32 %v2557, %v2561
      %vm2563 = vweird.f32 %v2327
      %vm2564 = vweird.f32 %v2557
      %vm2565 = vmor %vm2563, %vm2564
      %v2566 = vsel %vm2565, %v2557, %v2562
      %v2567 = vrsqrt.pop %v2328
      %v2568 = vmul.f32 %v2567, %v2328
      %v2569 = vmul.f32 %v2568, %v2567
      %v2570 = vmul.f32 0.5, %v2569
      %v2571 = vsub.f32 1.5, %v2570
      %v2572 = vmul.f32 %v2567, %v2571
      %vm2573 = vweird.f32 %v2328
      %vm2574 = vweird.f32 %v2567
      %vm2575 = vmor %vm2573, %vm2574
      %v2576 = vsel %vm2575, %v2567, %v2572
      %v2577 = vrsqrt.pop %v2329
      %v2578 = vmul.f32 %v2577, %v2329
      %v2579 = vmul.f32 %v2578, %v2577
      %v2580 = vmul.f32 0.5, %v2579
      %v2581 = vsub.f32 1.5, %v2580
      %v2582 = vmul.f32 %v2577, %v2581
      %vm2583 = vweird.f32 %v2329
      %vm2584 = vweird.f32 %v2577
      %vm2585 = vmor %vm2583, %vm2584
      %v2586 = vsel %vm2585, %v2577, %v2582
      %v2587 = vrsqrt.pop %v2330
      %v2588 = vmul.f32 %v2587, %v2330
      %v2589 = vmul.f32 %v2588, %v2587
      %v2590 = vmul.f32 0.5, %v2589
      %v2591 = vsub.f32 1.5, %v2590
      %v2592 = vmul.f32 %v2587, %v2591
      %vm2593 = vweird.f32 %v2330
      %vm2594 = vweird.f32 %v2587
      %vm2595 = vmor %vm2593, %vm2594
      %v2596 = vsel %vm2595, %v2587, %v2592
      %v2597 = vrsqrt.pop %v2331
      %v2598 = vmul.f32 %v2597, %v2331
      %v2599 = vmul.f32 %v2598, %v2597
      %v2600 = vmul.f32 0.5, %v2599
      %v2601 = vsub.f32 1.5, %v2600
      %v2602 = vmul.f32 %v2597, %v2601
      %vm2603 = vweird.f32 %v2331
      %vm2604 = vweird.f32 %v2597
      %vm2605 = vmor %vm2603, %vm2604
      %v2606 = vsel %vm2605, %v2597, %v2602
      %v2607 = vrsqrt.pop %v2332
      %v2608 = vmul.f32 %v2607, %v2332
      %v2609 = vmul.f32 %v2608, %v2607
      %v2610 = vmul.f32 0.5, %v2609
      %v2611 = vsub.f32 1.5, %v2610
      %v2612 = vmul.f32 %v2607, %v2611
      %vm2613 = vweird.f32 %v2332
      %vm2614 = vweird.f32 %v2607
      %vm2615 = vmor %vm2613, %vm2614
      %v2616 = vsel %vm2615, %v2607, %v2612
      %v2617 = vrsqrt.pop %v2333
      %v2618 = vmul.f32 %v2617, %v2333
      %v2619 = vmul.f32 %v2618, %v2617
      %v2620 = vmul.f32 0.5, %v2619
      %v2621 = vsub.f32 1.5, %v2620
      %v2622 = vmul.f32 %v2617, %v2621
      %vm2623 = vweird.f32 %v2333
      %vm2624 = vweird.f32 %v2617
      %vm2625 = vmor %vm2623, %vm2624
      %v2626 = vsel %vm2625, %v2617, %v2622
      %v2627 = vrsqrt.pop %v2334
      %v2628 = vmul.f32 %v2627, %v2334
      %v2629 = vmul.f32 %v2628, %v2627
      %v2630 = vmul.f32 0.5, %v2629
      %v2631 = vsub.f32 1.5, %v2630
      %v2632 = vmul.f32 %v2627, %v2631
      %vm2633 = vweird.f32 %v2334
      %vm2634 = vweird.f32 %v2627
      %vm2635 = vmor %vm2633, %vm2634
      %v2636 = vsel %vm2635, %v2627, %v2632
      %v2637 = vrsqrt.pop %v2335
      %v2638 = vmul.f32 %v2637, %v2335
      %v2639 = vmul.f32 %v2638, %v2637
      %v2640 = vmul.f32 0.5, %v2639
      %v2641 = vsub.f32 1.5, %v2640
      %v2642 = vmul.f32 %v2637, %v2641
      %vm2643 = vweird.f32 %v2335
      %vm2644 = vweird.f32 %v2637
      %vm2645 = vmor %vm2643, %vm2644
      %v2646 = vsel %vm2645, %v2637, %v2642
      %v2647 = vrsqrt.pop %v2336
      %v2648 = vmul.f32 %v2647, %v2336
      %v2649 = vmul.f32 %v2648, %v2647
      %v2650 = vmul.f32 0.5, %v2649
      %v2651 = vsub.f32 1.5, %v2650
      %v2652 = vmul.f32 %v2647, %v2651
      %vm2653 = vweird.f32 %v2336
      %vm2654 = vweird.f32 %v2647
      %vm2655 = vmor %vm2653, %vm2654
      %v2656 = vsel %vm2655, %v2647, %v2652
      %v2657 = vmul.f32 %v2145, %v2346
      %v2658 = vmul.f32 %v2146, %v2356
      %v2659 = vmul.f32 %v2147, %v2366
      %v2660 = vmul.f32 %v2148, %v2376
      %v2661 = vmul.f32 %v2149, %v2386
      %v2662 = vmul.f32 %v2150, %v2396
      %v2663 = vmul.f32 %v2151, %v2406
      %v2664 = vmul.f32 %v2152, %v2416
      %v2665 = vmul.f32 %v2153, %v2426
      %v2666 = vmul.f32 %v2154, %v2436
      %v2667 = vmul.f32 %v2155, %v2446
      %v2668 = vmul.f32 %v2156, %v2456
      %v2669 = vmul.f32 %v2157, %v2466
      %v2670 = vmul.f32 %v2158, %v2476
      %v2671 = vmul.f32 %v2159, %v2486
      %v2672 = vmul.f32 %v2160, %v2496
      %v2673 = vmul.f32 %v2161, %v2506
      %v2674 = vmul.f32 %v2162, %v2516
      %v2675 = vmul.f32 %v2163, %v2526
      %v2676 = vmul.f32 %v2164, %v2536
      %v2677 = vmul.f32 %v2165, %v2546
      %v2678 = vmul.f32 %v2166, %v2556
      %v2679 = vmul.f32 %v2167, %v2566
      %v2680 = vmul.f32 %v2168, %v2576
      %v2681 = vmul.f32 %v2169, %v2586
      %v2682 = vmul.f32 %v2170, %v2596
      %v2683 = vmul.f32 %v2171, %v2606
      %v2684 = vmul.f32 %v2172, %v2616
      %v2685 = vmul.f32 %v2173, %v2626
      %v2686 = vmul.f32 %v2174, %v2636
      %v2687 = vmul.f32 %v2175, %v2646
      %v2688 = vmul.f32 %v2176, %v2656
      %v2689 = vld [vmem:[%s4] sm:$0x1]
      %v2691 = vperm.slane %v2689, 0
      %v2693 = vmul.f32 %v2657, %v2691
      %v2694 = vmul.f32 %v2658, %v2691
      %v2695 = vmul.f32 %v2659, %v2691
      %v2696 = vmul.f32 %v2660, %v2691
      %v2697 = vmul.f32 %v2661, %v2691
      %v2698 = vmul.f32 %v2662, %v2691
      %v2699 = vmul.f32 %v2663, %v2691
      %v2700 = vmul.f32 %v2664, %v2691
      %v2701 = vmul.f32 %v2665, %v2691
      %v2702 = vmul.f32 %v2666, %v2691
      %v2703 = vmul.f32 %v2667, %v2691
      %v2704 = vmul.f32 %v2668, %v2691
      %v2705 = vmul.f32 %v2669, %v2691
      %v2706 = vmul.f32 %v2670, %v2691
      %v2707 = vmul.f32 %v2671, %v2691
      %v2708 = vmul.f32 %v2672, %v2691
      %v2709 = vmul.f32 %v2673, %v2691
      %v2710 = vmul.f32 %v2674, %v2691
      %v2711 = vmul.f32 %v2675, %v2691
      %v2712 = vmul.f32 %v2676, %v2691
      %v2713 = vmul.f32 %v2677, %v2691
      %v2714 = vmul.f32 %v2678, %v2691
      %v2715 = vmul.f32 %v2679, %v2691
      %v2716 = vmul.f32 %v2680, %v2691
      %v2717 = vmul.f32 %v2681, %v2691
      %v2718 = vmul.f32 %v2682, %v2691
      %v2719 = vmul.f32 %v2683, %v2691
      %v2720 = vmul.f32 %v2684, %v2691
      %v2721 = vmul.f32 %v2685, %v2691
      %v2722 = vmul.f32 %v2686, %v2691
      %v2723 = vmul.f32 %v2687, %v2691
      %v2724 = vmul.f32 %v2688, %v2691
      %v2725 = vld [vmem:[%s5] sm:$0x1]
      %v2727 = vperm.slane %v2725, 0
      %v2729 = vadd.f32 %v2693, %v2727
      %v2730 = vadd.f32 %v2694, %v2727
      %v2731 = vadd.f32 %v2695, %v2727
      %v2732 = vadd.f32 %v2696, %v2727
      %v2733 = vadd.f32 %v2697, %v2727
      %v2734 = vadd.f32 %v2698, %v2727
      %v2735 = vadd.f32 %v2699, %v2727
      %v2736 = vadd.f32 %v2700, %v2727
      %v2737 = vadd.f32 %v2701, %v2727
      %v2738 = vadd.f32 %v2702, %v2727
      %v2739 = vadd.f32 %v2703, %v2727
      %v2740 = vadd.f32 %v2704, %v2727
      %v2741 = vadd.f32 %v2705, %v2727
      %v2742 = vadd.f32 %v2706, %v2727
      %v2743 = vadd.f32 %v2707, %v2727
      %v2744 = vadd.f32 %v2708, %v2727
      %v2745 = vadd.f32 %v2709, %v2727
      %v2746 = vadd.f32 %v2710, %v2727
      %v2747 = vadd.f32 %v2711, %v2727
      %v2748 = vadd.f32 %v2712, %v2727
      %v2749 = vadd.f32 %v2713, %v2727
      %v2750 = vadd.f32 %v2714, %v2727
      %v2751 = vadd.f32 %v2715, %v2727
      %v2752 = vadd.f32 %v2716, %v2727
      %v2753 = vadd.f32 %v2717, %v2727
      %v2754 = vadd.f32 %v2718, %v2727
      %v2755 = vadd.f32 %v2719, %v2727
      %v2756 = vadd.f32 %v2720, %v2727
      %v2757 = vadd.f32 %v2721, %v2727
      %v2758 = vadd.f32 %v2722, %v2727
      %v2759 = vadd.f32 %v2723, %v2727
      %v2760 = vadd.f32 %v2724, %v2727
      %s2761 = sld [smem:[#allocation2]]
      %vm2762 = vcmp.gt.f32.partialorder %v2729, 0.0
      %vm2763 = vcmp.gt.f32.partialorder %v2730, 0.0
      %vm2764 = vcmp.gt.f32.partialorder %v2731, 0.0
      %vm2765 = vcmp.gt.f32.partialorder %v2732, 0.0
      %vm2766 = vcmp.gt.f32.partialorder %v2733, 0.0
      %vm2767 = vcmp.gt.f32.partialorder %v2734, 0.0
      %vm2768 = vcmp.gt.f32.partialorder %v2735, 0.0
      %vm2769 = vcmp.gt.f32.partialorder %v2736, 0.0
      %vm2770 = vcmp.gt.f32.partialorder %v2737, 0.0
      %vm2771 = vcmp.gt.f32.partialorder %v2738, 0.0
      %vm2772 = vcmp.gt.f32.partialorder %v2739, 0.0
      %vm2773 = vcmp.gt.f32.partialorder %v2740, 0.0
      %vm2774 = vcmp.gt.f32.partialorder %v2741, 0.0
      %vm2775 = vcmp.gt.f32.partialorder %v2742, 0.0
      %vm2776 = vcmp.gt.f32.partialorder %v2743, 0.0
      %vm2777 = vcmp.gt.f32.partialorder %v2744, 0.0
      %vm2778 = vcmp.gt.f32.partialorder %v2745, 0.0
      %vm2779 = vcmp.gt.f32.partialorder %v2746, 0.0
      %vm2780 = vcmp.gt.f32.partialorder %v2747, 0.0
      %vm2781 = vcmp.gt.f32.partialorder %v2748, 0.0
      %vm2782 = vcmp.gt.f32.partialorder %v2749, 0.0
      %vm2783 = vcmp.gt.f32.partialorder %v2750, 0.0
      %vm2784 = vcmp.gt.f32.partialorder %v2751, 0.0
      %vm2785 = vcmp.gt.f32.partialorder %v2752, 0.0
      %vm2786 = vcmp.gt.f32.partialorder %v2753, 0.0
      %vm2787 = vcmp.gt.f32.partialorder %v2754, 0.0
      %vm2788 = vcmp.gt.f32.partialorder %v2755, 0.0
      %vm2789 = vcmp.gt.f32.partialorder %v2756, 0.0
      %vm2790 = vcmp.gt.f32.partialorder %v2757, 0.0
      %vm2791 = vcmp.gt.f32.partialorder %v2758, 0.0
      %vm2792 = vcmp.gt.f32.partialorder %v2759, 0.0
      %vm2793 = vcmp.gt.f32.partialorder %v2760, 0.0
      %v2794 = vstv %s2761
      %v2795 = vmul.f32 %v2794, %v2729
      %v2796 = vmul.f32 %v2794, %v2730
      %v2797 = vmul.f32 %v2794, %v2731
      %v2798 = vmul.f32 %v2794, %v2732
      %v2799 = vmul.f32 %v2794, %v2733
      %v2800 = vmul.f32 %v2794, %v2734
      %v2801 = vmul.f32 %v2794, %v2735
      %v2802 = vmul.f32 %v2794, %v2736
      %v2803 = vmul.f32 %v2794, %v2737
      %v2804 = vmul.f32 %v2794, %v2738
      %v2805 = vmul.f32 %v2794, %v2739
      %v2806 = vmul.f32 %v2794, %v2740
      %v2807 = vmul.f32 %v2794, %v2741
      %v2808 = vmul.f32 %v2794, %v2742
      %v2809 = vmul.f32 %v2794, %v2743
      %v2810 = vmul.f32 %v2794, %v2744
      %v2811 = vmul.f32 %v2794, %v2745
      %v2812 = vmul.f32 %v2794, %v2746
      %v2813 = vmul.f32 %v2794, %v2747
      %v2814 = vmul.f32 %v2794, %v2748
      %v2815 = vmul.f32 %v2794, %v2749
      %v2816 = vmul.f32 %v2794, %v2750
      %v2817 = vmul.f32 %v2794, %v2751
      %v2818 = vmul.f32 %v2794, %v2752
      %v2819 = vmul.f32 %v2794, %v2753
      %v2820 = vmul.f32 %v2794, %v2754
      %v2821 = vmul.f32 %v2794, %v2755
      %v2822 = vmul.f32 %v2794, %v2756
      %v2823 = vmul.f32 %v2794, %v2757
      %v2824 = vmul.f32 %v2794, %v2758
      %v2825 = vmul.f32 %v2794, %v2759
      %v2826 = vmul.f32 %v2794, %v2760
      %v2827 = vsel %vm2762, %v2729, %v2795
      %v2828 = vsel %vm2763, %v2730, %v2796
      %v2829 = vsel %vm2764, %v2731, %v2797
      %v2830 = vsel %vm2765, %v2732, %v2798
      %v2831 = vsel %vm2766, %v2733, %v2799
      %v2832 = vsel %vm2767, %v2734, %v2800
      %v2833 = vsel %vm2768, %v2735, %v2801
      %v2834 = vsel %vm2769, %v2736, %v2802
      %v2835 = vsel %vm2770, %v2737, %v2803
      %v2836 = vsel %vm2771, %v2738, %v2804
      %v2837 = vsel %vm2772, %v2739, %v2805
      %v2838 = vsel %vm2773, %v2740, %v2806
      %v2839 = vsel %vm2774, %v2741, %v2807
      %v2840 = vsel %vm2775, %v2742, %v2808
      %v2841 = vsel %vm2776, %v2743, %v2809
      %v2842 = vsel %vm2777, %v2744, %v2810
      %v2843 = vsel %vm2778, %v2745, %v2811
      %v2844 = vsel %vm2779, %v2746, %v2812
      %v2845 = vsel %vm2780, %v2747, %v2813
      %v2846 = vsel %vm2781, %v2748, %v2814
      %v2847 = vsel %vm2782, %v2749, %v2815
      %v2848 = vsel %vm2783, %v2750, %v2816
      %v2849 = vsel %vm2784, %v2751, %v2817
      %v2850 = vsel %vm2785, %v2752, %v2818
      %v2851 = vsel %vm2786, %v2753, %v2819
      %v2852 = vsel %vm2787, %v2754, %v2820
      %v2853 = vsel %vm2788, %v2755, %v2821
      %v2854 = vsel %vm2789, %v2756, %v2822
      %v2855 = vsel %vm2790, %v2757, %v2823
      %v2856 = vsel %vm2791, %v2758, %v2824
      %v2857 = vsel %vm2792, %v2759, %v2825
      %v2858 = vsel %vm2793, %v2760, %v2826
      %2859 = vst [vmem:[%s252] sm:$0xff] %v2827
      %2860 = vst [vmem:[%s252 + $0x8] sm:$0xff] %v2828
      %2861 = vst [vmem:[%s252 + $0x10] sm:$0xff] %v2829
      %2862 = vst [vmem:[%s252 + $0x18] sm:$0xff] %v2830
      %2863 = vst [vmem:[%s252 + $0x20] sm:$0xff] %v2831
      %2864 = vst [vmem:[%s252 + $0x28] sm:$0xff] %v2832
      %2865 = vst [vmem:[%s252 + $0x30] sm:$0xff] %v2833
      %2866 = vst [vmem:[%s252 + $0x38] sm:$0xff] %v2834
      %2867 = vst [vmem:[%s252 + $0x40] sm:$0xff] %v2835
      %2868 = vst [vmem:[%s252 + $0x48] sm:$0xff] %v2836
      %2869 = vst [vmem:[%s252 + $0x50] sm:$0xff] %v2837
      %2870 = vst [vmem:[%s252 + $0x58] sm:$0xff] %v2838
      %2871 = vst [vmem:[%s252 + $0x60] sm:$0xff] %v2839
      %2872 = vst [vmem:[%s252 + $0x68] sm:$0xff] %v2840
      %2873 = vst [vmem:[%s252 + $0x70] sm:$0xff] %v2841
      %2874 = vst [vmem:[%s252 + $0x78] sm:$0xff] %v2842
      %2875 = vst [vmem:[%s252 + $0x80] sm:$0xff] %v2843
      %2876 = vst [vmem:[%s252 + $0x88] sm:$0xff] %v2844
      %2877 = vst [vmem:[%s252 + $0x90] sm:$0xff] %v2845
      %2878 = vst [vmem:[%s252 + $0x98] sm:$0xff] %v2846
      %2879 = vst [vmem:[%s252 + $0xa0] sm:$0xff] %v2847
      %2880 = vst [vmem:[%s252 + $0xa8] sm:$0xff] %v2848
      %2881 = vst [vmem:[%s252 + $0xb0] sm:$0xff] %v2849
      %2882 = vst [vmem:[%s252 + $0xb8] sm:$0xff] %v2850
      %2883 = vst [vmem:[%s252 + $0xc0] sm:$0xff] %v2851
      %2884 = vst [vmem:[%s252 + $0xc8] sm:$0xff] %v2852
      %2885 = vst [vmem:[%s252 + $0xd0] sm:$0xff] %v2853
      %2886 = vst [vmem:[%s252 + $0xd8] sm:$0xff] %v2854
      %2887 = vst [vmem:[%s252 + $0xe0] sm:$0xff] %v2855
      %2888 = vst [vmem:[%s252 + $0xe8] sm:$0xff] %v2856
      %2889 = vst [vmem:[%s252 + $0xf0] sm:$0xff] %v2857
      %2890 = vst [vmem:[%s252 + $0xf8] sm:$0xff] %v2858
      %p2891 = scmp.lt.s32.totalorder %s18, 1
      %s2892 = scalar_select %p2891, %s18, 1
      %s2893 = smul.addr %s2892, 32
      %s2894 = smul.addr %s2893, 8
      %s2895 = scalar_lea.vmem %s6, %s2894
      // Predicated region
      $region45: #{conv_block_forward_nhwc.1} parent=43 // pred_check
        %p2896 = pneg %p167
      $region46: #{conv_block_forward_nhwc.1} parent=43 // pred_check_branch
        %2898 = sbr.rel (%p2896) target = $region48
      $region47: #{conv_block_forward_nhwc.1} parent=43 // pred_region
        _
      $region48: #{conv_block_forward_nhwc.1} parent=43 // pred_fallthru
        _
    $region44: #{conv_block_forward_nhwc.1} parent=5 // pred_fallthru
      _
    %p2899 = scmp.le.s32.totalorder 2, %s13
    // Predicated region
    $region49: #{conv_block_forward_nhwc.1} parent=5 // pred_check
      %p2900 = pneg %p2899
    $region50: #{conv_block_forward_nhwc.1} parent=5 // pred_check_branch
      %2902 = sbr.rel (%p2900) target = $region52
    $region51: #{conv_block_forward_nhwc.1} parent=5 // pred_region
      %s2903 = ssub.s32 %s13, 2
      // Predicated region
      $region53: #{conv_block_forward_nhwc.1} parent=51 // pred_check
        %p2904 = pneg %p173
      $region54: #{conv_block_forward_nhwc.1} parent=51 // pred_check_branch
        %2906 = sbr.rel (%p2904) target = $region56
      $region55: #{conv_block_forward_nhwc.1} parent=51 // pred_region
        %p2907 = scmp.lt.s32.totalorder %s19, 1
        %s2908 = scalar_select %p2907, %s19, 1
        %s2909 = smul.addr %s2908, 32
        %s2910 = smul.addr %s2909, 8
        %s2911 = scalar_lea.vmem %s6, %s2910
      $region56: #{conv_block_forward_nhwc.1} parent=51 // pred_fallthru
        _
    $region52: #{conv_block_forward_nhwc.1} parent=5 // pred_fallthru
      _
  $region6: #{conv_block_forward_nhwc.1} parent=0 // loop_footer
    %s17 = sadd.s32 1, %s13
  $region7: #{conv_block_forward_nhwc.1} parent=0 // loop_footer_branch
    %12 = sbr.rel target = $region3
  $region8: #{conv_block_forward_nhwc.1} parent=0 // loop_exit
    _

</llo_original>
